<compile_context>
chip_gen: v7x
topology: tpu7x:2x2x1
jax: 0.10.0
libtpu: 0.0.40
codegen_flags: <defaults>
</compile_context>

<pallas_src>
import functools

import jax
import jax.numpy as jnp
from jax import lax
from jax.experimental import pallas as pl
from jax.experimental.pallas import tpu as pltpu

BN_EPS = 1e-5


# ----------------------------------------------------------------------------
# Fused ARM kernel (one batch element per grid step)
# ----------------------------------------------------------------------------

def _arm_kernel(x_ref, wc_ref, csb_ref, wa_ref, asb_ref, o_ref, *,
                w, rows_per_chunk, n_chunks):
    """Fused AttentionRefinementModule forward for one image.

    x_ref   : (1, (H+2)*W, 3*Cin) bf16  dj-packed, row-padded NHWC input
    wc_ref  : (3, 3*Cin, Cout)    bf16  conv taps, [di, dj*Cin+cin, cout]
    csb_ref : (2, Cout)           f32   folded conv-BN scale / bias
    wa_ref  : (Cout, Cout)        f32   1x1 attention conv, [cin, cout]
    asb_ref : (2, Cout)           f32   folded attention-BN scale / bias
    o_ref   : (1, M, Cout)        f32   M = H*W (no junk columns)
    """
    m = o_ref.shape[1]
    cout = o_ref.shape[2]

    scale = csb_ref[0:1, :]          # hoisted: read once, reused per chunk
    bias = csb_ref[1:2, :]

    # --- pass 1: conv3x3 (3 dj-packed MXU matmuls) + BN + ReLU, store feat
    #     into o_ref, and accumulate the global-average-pool numerator. ------
    def conv_chunk(c, gap):
        r0 = pl.multiple_of(c * rows_per_chunk, rows_per_chunk)
        acc = jnp.dot(x_ref[0, pl.ds(r0, rows_per_chunk), :], wc_ref[0],
                      preferred_element_type=jnp.float32)
        acc = acc + jnp.dot(x_ref[0, pl.ds(r0 + w, rows_per_chunk), :], wc_ref[1],
                            preferred_element_type=jnp.float32)
        acc = acc + jnp.dot(x_ref[0, pl.ds(r0 + 2 * w, rows_per_chunk), :], wc_ref[2],
                            preferred_element_type=jnp.float32)
        feat = jnp.maximum(acc * scale + bias, 0.0)          # (chunk, Cout)
        o_ref[0, pl.ds(r0, rows_per_chunk), :] = feat
        return gap + jnp.sum(feat, axis=0, keepdims=True)

    gap = lax.fori_loop(0, n_chunks, conv_chunk,
                        jnp.zeros((1, cout), jnp.float32))
    gap = gap * (1.0 / m)                                     # mean over H*W

    # --- 1x1 conv + BN + sigmoid attention (tiny; kept in f32). -------------
    gap8 = jnp.broadcast_to(gap, (8, cout))                   # avoid M=1 matmul
    att = jnp.dot(gap8, wa_ref[...], preferred_element_type=jnp.float32)[0:1, :]
    att = jax.nn.sigmoid(att * asb_ref[0:1, :] + asb_ref[1:2, :])   # (1, Cout)

    # --- pass 2: revisit o_ref (VMEM-only) and apply the attention scale. ---
    def scale_chunk(c, carry):
        r0 = pl.multiple_of(c * rows_per_chunk, rows_per_chunk)
        o_ref[0, pl.ds(r0, rows_per_chunk), :] = (
            o_ref[0, pl.ds(r0, rows_per_chunk), :] * att)
        return carry

    lax.fori_loop(0, n_chunks, scale_chunk, 0)


# ----------------------------------------------------------------------------
# Wrapper: layout plumbing + BN folding + pallas_call
# ----------------------------------------------------------------------------

def _fold_bn(bn):
    scale = bn["gamma"] * lax.rsqrt(bn["var"] + BN_EPS)
    bias = bn["beta"] - bn["mean"] * scale
    return jnp.stack([scale, bias]).astype(jnp.float32)   # (2, C)


def _rows_per_chunk(h, w, target=512):
    """Largest whole-image-row chunk (divides H) with <= `target` rows."""
    hc = 1
    for d in range(h, 0, -1):
        if h % d == 0 and d * w <= target:
            hc = d
            break
    return hc * w


def attention_refinement_forward(x_nchw, params):
    """AttentionRefinementModule forward. x: (N, Cin, H, W) -> (N, Cout, H, W)."""
    n, cin, h, w = x_nchw.shape
    cout = params["conv_w"].shape[0]
    m = h * w
    rows_per_chunk = _rows_per_chunk(h, w)
    n_chunks = m // rows_per_chunk

    # NCHW -> NHWC in bf16 (MXU dtype), pad H and W by 1 each side.
    x = jnp.transpose(x_nchw, (0, 2, 3, 1)).astype(jnp.bfloat16)
    xpad = jnp.pad(x, ((0, 0), (1, 1), (1, 1), (0, 0)))
    # dj-pack the three horizontal taps along channels -> (N, H+2, W, 3*Cin);
    # flattening rows then gives aligned di windows starting at 0, W, 2W.
    xdj = jnp.concatenate(
        [xpad[:, :, 0:w, :], xpad[:, :, 1:w + 1, :], xpad[:, :, 2:w + 2, :]],
        axis=-1)
    xflat = xdj.reshape(n, (h + 2) * w, 3 * cin)

    # Conv taps (3, 3*Cin, Cout) bf16:  wt[di, dj*Cin+ci, co] = conv_w[co, ci, di, dj].
    wt = jnp.transpose(params["conv_w"], (2, 3, 1, 0)).reshape(3, 3 * cin, cout)
    wt = wt.astype(jnp.bfloat16)
    csb = _fold_bn(params["conv_bn"])

    # 1x1 attention conv as (Cin=Cout, Cout) matrix (f32), BN folded.
    wa = params["atten_w"].reshape(cout, cout).T.astype(jnp.float32)
    asb = _fold_bn(params["atten_bn"])

    flops = n * (2 * 9 * h * w * cin * cout + 2 * 8 * cout * cout + 2 * m * cout)
    bytes_accessed = (xflat.size * 2 + wt.size * 2 + csb.size * 4
                      + wa.size * 4 + asb.size * 4 + n * m * cout * 4)

    out_flat = pl.pallas_call(
        functools.partial(_arm_kernel, w=w, rows_per_chunk=rows_per_chunk,
                          n_chunks=n_chunks),
        out_shape=jax.ShapeDtypeStruct((n, m, cout), jnp.float32),
        grid=(n,),
        in_specs=[
            pl.BlockSpec((1, (h + 2) * w, 3 * cin), lambda i: (i, 0, 0)),
            pl.BlockSpec((3, 3 * cin, cout), lambda i: (0, 0, 0)),
            pl.BlockSpec((2, cout), lambda i: (0, 0)),
            pl.BlockSpec((cout, cout), lambda i: (0, 0)),
            pl.BlockSpec((2, cout), lambda i: (0, 0)),
        ],
        out_specs=pl.BlockSpec((1, m, cout), lambda i: (i, 0, 0)),
        compiler_params=pltpu.CompilerParams(dimension_semantics=("parallel",)),
        cost_estimate=pl.CostEstimate(flops=flops, transcendentals=n * cout,
                                      bytes_accessed=bytes_accessed),
    )(xflat, wt, csb, wa, asb)

    # Back to NCHW to match the PyTorch module. (NHWC consumers could instead
    # take out_flat.reshape(n, h, w, cout) directly and skip this transpose.)
    out = out_flat.reshape(n, h, w, cout)
    return jnp.transpose(out, (0, 3, 1, 2))


# ----------------------------------------------------------------------------
# Pure-JAX (XLA) reference + deterministic parameters
# ----------------------------------------------------------------------------

def _reference_forward(x_nchw, params):
    dn = ("NCHW", "OIHW", "NCHW")

    def bn(t, p):
        scale = p["gamma"] * lax.rsqrt(p["var"] + BN_EPS)
        bias = p["beta"] - p["mean"] * scale
        return t * scale[None, :, None, None] + bias[None, :, None, None]

    feat = lax.conv_general_dilated(x_nchw, params["conv_w"], (1, 1),
                                    ((1, 1), (1, 1)), dimension_numbers=dn)
    feat = jnp.maximum(bn(feat, params["conv_bn"]), 0.0)
    att = jnp.mean(feat, axis=(2, 3), keepdims=True)
    att = lax.conv_general_dilated(att, params["atten_w"], (1, 1),
                                   ((0, 0), (0, 0)), dimension_numbers=dn)
    att = jax.nn.sigmoid(bn(att, params["atten_bn"]))
    return feat * att


def init_arm_params(key, in_chan, out_chan):
    k = jax.random.split(key, 4)

    def bn_params(kk, c):
        k1, k2, k3, k4 = jax.random.split(kk, 4)
        return dict(gamma=1.0 + 0.1 * jax.random.normal(k1, (c,), jnp.float32),
                    beta=0.1 * jax.random.normal(k2, (c,), jnp.float32),
                    mean=0.1 * jax.random.normal(k3, (c,), jnp.float32),
                    var=1.0 + 0.1 * jnp.abs(jax.random.normal(k4, (c,), jnp.float32)))

    conv_w = jax.random.normal(k[0], (out_chan, in_chan, 3, 3), jnp.float32)
    conv_w = conv_w / jnp.sqrt(9.0 * in_chan)
    atten_w = jax.random.normal(k[1], (out_chan, out_chan, 1, 1), jnp.float32)
    atten_w = atten_w / jnp.sqrt(1.0 * out_chan)
    return dict(conv_w=conv_w, conv_bn=bn_params(k[2], out_chan),
                atten_w=atten_w, atten_bn=bn_params(k[3], out_chan))


if __name__ == "__main__":
    IN_CHAN, OUT_CHAN, H, W, N = 32, 128, 16, 16, 2
    key = jax.random.PRNGKey(0)
    kp, kx = jax.random.split(key)
    params = init_arm_params(kp, IN_CHAN, OUT_CHAN)
    x = jax.random.normal(kx, (N, IN_CHAN, H, W), jnp.float32)

    out = jax.jit(attention_refinement_forward)(x, params)
    out = jax.block_until_ready(out)
    assert out.shape == (N, OUT_CHAN, H, W)

    ref = _reference_forward(x, params)
    err = float(jnp.max(jnp.abs(out - ref)))
    assert err < 1e-1, f"max |err| = {err}"
    print("KERNEL_OK")
</pallas_src>

<mosaic_0001>
module attributes {stable_mosaic.version = 11 : i64} {
  func.func @_arm_kernel(%arg0: i32, %arg1: memref<1x288x96xbf16, #tpu.memory_space<vmem>>, %arg2: memref<3x96x128xbf16, #tpu.memory_space<vmem>>, %arg3: memref<2x128xf32, #tpu.memory_space<vmem>>, %arg4: memref<128x128xf32, #tpu.memory_space<vmem>>, %arg5: memref<2x128xf32, #tpu.memory_space<vmem>>, %arg6: memref<1x256x128xf32, #tpu.memory_space<vmem>>) attributes {dimension_semantics = [#tpu.dimension_semantics<parallel>], iteration_bounds = array<i64: 2>, scalar_prefetch = 0 : i64, scratch_operands = 0 : i64, tpu.core_type = #tpu.core_type<tc>, window_params = [{transform_indices = @transform_0, window_bounds = array<i64: 1, 288, 96>}, {pipeline_mode = #tpu.pipeline_mode<synchronous>, transform_indices = @transform_1, window_bounds = array<i64: 3, 96, 128>}, {pipeline_mode = #tpu.pipeline_mode<synchronous>, transform_indices = @transform_2, window_bounds = array<i64: 2, 128>}, {pipeline_mode = #tpu.pipeline_mode<synchronous>, transform_indices = @transform_3, window_bounds = array<i64: 128, 128>}, {pipeline_mode = #tpu.pipeline_mode<synchronous>, transform_indices = @transform_4, window_bounds = array<i64: 2, 128>}, {transform_indices = @transform_5, window_bounds = array<i64: 1, 256, 128>}]} {
    %c0 = arith.constant 0 : index
    %c0_0 = arith.constant 0 : index
    %0 = vector.load %arg3[%c0, %c0_0] : memref<2x128xf32, #tpu.memory_space<vmem>>, vector<1x128xf32>
    %c1 = arith.constant 1 : index
    %c0_1 = arith.constant 0 : index
    %1 = vector.load %arg3[%c1, %c0_1] : memref<2x128xf32, #tpu.memory_space<vmem>>, vector<1x128xf32>
    %cst = arith.constant 0.000000e+00 : f32
    %2 = vector.broadcast %cst : f32 to vector<1x128xf32>
    %c0_i32 = arith.constant 0 : i32
    %c256_i32 = arith.constant 256 : i32
    %3 = arith.muli %c0_i32, %c256_i32 : i32
    %4 = tpu.assume_multiple %3, 256 : i32
    %c0_2 = arith.constant 0 : index
    %5 = arith.index_cast %4 : i32 to index
    %c0_3 = arith.constant 0 : index
    %6 = vector.load %arg1[%c0_2, %5, %c0_3] : memref<1x288x96xbf16, #tpu.memory_space<vmem>>, vector<1x256x96xbf16>
    %7 = vector.shape_cast %6 : vector<1x256x96xbf16> to vector<256x96xbf16>
    %c0_4 = arith.constant 0 : index
    %c0_5 = arith.constant 0 : index
    %c0_6 = arith.constant 0 : index
    %8 = vector.load %arg2[%c0_4, %c0_5, %c0_6] : memref<3x96x128xbf16, #tpu.memory_space<vmem>>, vector<1x96x128xbf16>
    %9 = vector.shape_cast %8 : vector<1x96x128xbf16> to vector<96x128xbf16>
    %cst_7 = arith.constant dense<0.000000e+00> : vector<256x128xf32>
    %10 = tpu.matmul %7, %9, %cst_7 {dimension_numbers = #tpu.dot_dimension_numbers<[1], [0], [0], [1], [0, 0, 1, 1], [], []>} : vector<256x96xbf16>, vector<96x128xbf16>, vector<256x128xf32> -> vector<256x128xf32>
    %c16_i32 = arith.constant 16 : i32
    %11 = arith.addi %4, %c16_i32 : i32
    %c0_8 = arith.constant 0 : index
    %12 = arith.index_cast %11 : i32 to index
    %c0_9 = arith.constant 0 : index
    %13 = vector.load %arg1[%c0_8, %12, %c0_9] : memref<1x288x96xbf16, #tpu.memory_space<vmem>>, vector<1x256x96xbf16>
    %14 = vector.shape_cast %13 : vector<1x256x96xbf16> to vector<256x96xbf16>
    %c1_10 = arith.constant 1 : index
    %c0_11 = arith.constant 0 : index
    %c0_12 = arith.constant 0 : index
    %15 = vector.load %arg2[%c1_10, %c0_11, %c0_12] : memref<3x96x128xbf16, #tpu.memory_space<vmem>>, vector<1x96x128xbf16>
    %16 = vector.shape_cast %15 : vector<1x96x128xbf16> to vector<96x128xbf16>
    %cst_13 = arith.constant dense<0.000000e+00> : vector<256x128xf32>
    %17 = tpu.matmul %14, %16, %cst_13 {dimension_numbers = #tpu.dot_dimension_numbers<[1], [0], [0], [1], [0, 0, 1, 1], [], []>} : vector<256x96xbf16>, vector<96x128xbf16>, vector<256x128xf32> -> vector<256x128xf32>
    %18 = arith.addf %10, %17 : vector<256x128xf32>
    %c32_i32 = arith.constant 32 : i32
    %19 = arith.addi %4, %c32_i32 : i32
    %c0_14 = arith.constant 0 : index
    %20 = arith.index_cast %19 : i32 to index
    %c0_15 = arith.constant 0 : index
    %21 = vector.load %arg1[%c0_14, %20, %c0_15] : memref<1x288x96xbf16, #tpu.memory_space<vmem>>, vector<1x256x96xbf16>
    %22 = vector.shape_cast %21 : vector<1x256x96xbf16> to vector<256x96xbf16>
    %c2 = arith.constant 2 : index
    %c0_16 = arith.constant 0 : index
    %c0_17 = arith.constant 0 : index
    %23 = vector.load %arg2[%c2, %c0_16, %c0_17] : memref<3x96x128xbf16, #tpu.memory_space<vmem>>, vector<1x96x128xbf16>
    %24 = vector.shape_cast %23 : vector<1x96x128xbf16> to vector<96x128xbf16>
    %cst_18 = arith.constant dense<0.000000e+00> : vector<256x128xf32>
    %25 = tpu.matmul %22, %24, %cst_18 {dimension_numbers = #tpu.dot_dimension_numbers<[1], [0], [0], [1], [0, 0, 1, 1], [], []>} : vector<256x96xbf16>, vector<96x128xbf16>, vector<256x128xf32> -> vector<256x128xf32>
    %26 = arith.addf %18, %25 : vector<256x128xf32>
    %27 = vector.broadcast %0 : vector<1x128xf32> to vector<256x128xf32>
    %28 = arith.mulf %26, %27 : vector<256x128xf32>
    %29 = vector.broadcast %1 : vector<1x128xf32> to vector<256x128xf32>
    %30 = arith.addf %28, %29 : vector<256x128xf32>
    %cst_19 = arith.constant 0.000000e+00 : f32
    %31 = vector.broadcast %cst_19 : f32 to vector<256x128xf32>
    %32 = arith.maximumf %30, %31 : vector<256x128xf32>
    %c0_20 = arith.constant 0 : index
    %33 = arith.index_cast %4 : i32 to index
    %c0_21 = arith.constant 0 : index
    %34 = vector.load %arg6[%c0_20, %33, %c0_21] : memref<1x256x128xf32, #tpu.memory_space<vmem>>, vector<1x256x128xf32>
    %35 = vector.shape_cast %34 : vector<1x256x128xf32> to vector<256x128xf32>
    %36 = vector.shape_cast %32 : vector<256x128xf32> to vector<1x256x128xf32>
    tpu.vector_store %arg6[%c0_20, %33, %c0_21], %36 {strides = array<i32>} : memref<1x256x128xf32, #tpu.memory_space<vmem>>, vector<1x256x128xf32>,
    %cst_22 = arith.constant dense<0.000000e+00> : vector<128xf32>
    %37 = vector.multi_reduction <add>, %32, %cst_22 [0] : vector<256x128xf32> to vector<128xf32>
    %38 = vector.shape_cast %37 : vector<128xf32> to vector<1x128xf32>
    %39 = arith.addf %2, %38 : vector<1x128xf32>
    %c1_i32 = arith.constant 1 : i32
    %cst_23 = arith.constant 3.906250e-03 : f32
    %40 = vector.broadcast %cst_23 : f32 to vector<1x128xf32>
    %41 = arith.mulf %39, %40 : vector<1x128xf32>
    %42 = vector.shape_cast %41 : vector<1x128xf32> to vector<1x128xf32>
    %43 = vector.broadcast %42 : vector<1x128xf32> to vector<8x128xf32>
    %c0_24 = arith.constant 0 : index
    %c0_25 = arith.constant 0 : index
    %44 = vector.load %arg4[%c0_24, %c0_25] : memref<128x128xf32, #tpu.memory_space<vmem>>, vector<128x128xf32>
    %cst_26 = arith.constant dense<0.000000e+00> : vector<8x128xf32>
    %45 = tpu.matmul %43, %44, %cst_26 {dimension_numbers = #tpu.dot_dimension_numbers<[1], [0], [0], [1], [0, 0, 1, 1], [], []>} : vector<8x128xf32>, vector<128x128xf32>, vector<8x128xf32> -> vector<8x128xf32>
    %46 = vector.extract_strided_slice %45 {offsets = [0, 0], sizes = [1, 128], strides = [1, 1]} : vector<8x128xf32> to vector<1x128xf32>
    %c0_27 = arith.constant 0 : index
    %c0_28 = arith.constant 0 : index
    %47 = vector.load %arg5[%c0_27, %c0_28] : memref<2x128xf32, #tpu.memory_space<vmem>>, vector<1x128xf32>
    %48 = arith.mulf %46, %47 : vector<1x128xf32>
    %c1_29 = arith.constant 1 : index
    %c0_30 = arith.constant 0 : index
    %49 = vector.load %arg5[%c1_29, %c0_30] : memref<2x128xf32, #tpu.memory_space<vmem>>, vector<1x128xf32>
    %50 = arith.addf %48, %49 : vector<1x128xf32>
    %51 = arith.negf %50 : vector<1x128xf32>
    %52 = math.exp %51 : vector<1x128xf32>
    %cst_31 = arith.constant 1.000000e+00 : f32
    %53 = vector.broadcast %cst_31 : f32 to vector<1x128xf32>
    %54 = arith.addf %53, %52 : vector<1x128xf32>
    %55 = arith.divf %53, %54 : vector<1x128xf32>
    %c0_i32_32 = arith.constant 0 : i32
    %c256_i32_33 = arith.constant 256 : i32
    %56 = arith.muli %c0_i32_32, %c256_i32_33 : i32
    %57 = tpu.assume_multiple %56, 256 : i32
    %c0_34 = arith.constant 0 : index
    %58 = arith.index_cast %57 : i32 to index
    %c0_35 = arith.constant 0 : index
    %59 = vector.load %arg6[%c0_34, %58, %c0_35] : memref<1x256x128xf32, #tpu.memory_space<vmem>>, vector<1x256x128xf32>
    %60 = vector.shape_cast %59 : vector<1x256x128xf32> to vector<256x128xf32>
    %61 = vector.broadcast %55 : vector<1x128xf32> to vector<256x128xf32>
    %62 = arith.mulf %60, %61 : vector<256x128xf32>
    %c0_36 = arith.constant 0 : index
    %63 = arith.index_cast %57 : i32 to index
    %c0_37 = arith.constant 0 : index
    %64 = vector.load %arg6[%c0_36, %63, %c0_37] : memref<1x256x128xf32, #tpu.memory_space<vmem>>, vector<1x256x128xf32>
    %65 = vector.shape_cast %64 : vector<1x256x128xf32> to vector<256x128xf32>
    %66 = vector.shape_cast %62 : vector<256x128xf32> to vector<1x256x128xf32>
    tpu.vector_store %arg6[%c0_36, %63, %c0_37], %66 {strides = array<i32>} : memref<1x256x128xf32, #tpu.memory_space<vmem>>, vector<1x256x128xf32>,
    %c1_i32_38 = arith.constant 1 : i32
    return
  }
  func.func @transform_0(%arg0: i32) -> (i32, i32, i32) {
    %c0_i32 = arith.constant 0 : i32
    %c0_i32_0 = arith.constant 0 : i32
    %c0_i32_1 = arith.constant 0 : i32
    return %arg0, %c0_i32, %c0_i32_0 : i32, i32, i32
  }
  func.func @transform_1(%arg0: i32) -> (i32, i32, i32) {
    %c0_i32 = arith.constant 0 : i32
    %c0_i32_0 = arith.constant 0 : i32
    %c0_i32_1 = arith.constant 0 : i32
    %c0_i32_2 = arith.constant 0 : i32
    return %c0_i32, %c0_i32_0, %c0_i32_1 : i32, i32, i32
  }
  func.func @transform_2(%arg0: i32) -> (i32, i32) {
    %c0_i32 = arith.constant 0 : i32
    %c0_i32_0 = arith.constant 0 : i32
    %c0_i32_1 = arith.constant 0 : i32
    return %c0_i32, %c0_i32_0 : i32, i32
  }
  func.func @transform_3(%arg0: i32) -> (i32, i32) {
    %c0_i32 = arith.constant 0 : i32
    %c0_i32_0 = arith.constant 0 : i32
    %c0_i32_1 = arith.constant 0 : i32
    return %c0_i32, %c0_i32_0 : i32, i32
  }
  func.func @transform_4(%arg0: i32) -> (i32, i32) {
    %c0_i32 = arith.constant 0 : i32
    %c0_i32_0 = arith.constant 0 : i32
    %c0_i32_1 = arith.constant 0 : i32
    return %c0_i32, %c0_i32_0 : i32, i32
  }
  func.func @transform_5(%arg0: i32) -> (i32, i32, i32) {
    %c0_i32 = arith.constant 0 : i32
    %c0_i32_0 = arith.constant 0 : i32
    %c0_i32_1 = arith.constant 0 : i32
    return %arg0, %c0_i32, %c0_i32_0 : i32, i32, i32
  }
}

</mosaic_0001>

<llo_original>
// kernel: attention_refinement_forward.1
$region0: #{attention_refinement_forward.1}
  #allocation0 [shape = 'u32[]', space=smem, size = 0x4, offset = 0x4, fixed_abs, tag = 'smem constant byte address 0x4 - core index']
  #allocation1 [shape = 'u32[144,128]{1,0:T(1,128)}', space=vmem, size = 0x12000, scoped, tag = 'internal scratch']
  %s0 = inlined_call_operand.vmem [shape: bf16[2,288,96], index: 0, kind: input, shape index: {}]
  %s1 = inlined_call_operand.vmem [shape: bf16[3,96,128], index: 1, kind: input, shape index: {}]
  %s2 = inlined_call_operand.vmem [shape: f32[2,128], index: 2, kind: input, shape index: {}]
  %s3 = inlined_call_operand.vmem [shape: f32[128,128], index: 3, kind: input, shape index: {}]
  %s4 = inlined_call_operand.vmem [shape: f32[2,128], index: 4, kind: input, shape index: {}]
  %s5 = inlined_call_operand.hbm [shape: f32[2,256,128], index: 5, kind: output, shape index: {}]
  %s6 = sld [smem:[#allocation0]]
  $region53: #{attention_refinement_forward.1} parent=0
    _
  %s8 = ssub.s32 1, %s6
  %s9 = scalar_select 0, %s8, %s6
  $region1: #{attention_refinement_forward.1} parent=0
    #allocation2 [shape = 'u8[262144]{0}', space=vmem, size = 0x40000, scoped, tag = 'output window, operand 0']
    #allocation3 [shape = 's32[2]{0}', space=sflag, size = 0x8, scoped, tag = 'scoped memory for attention_refinement_forward.1']
    %10 = vsyncpa [#allocation3], 0
    %s11 = scalar_lea.sflag [#allocation3], 1
    %12 = vsyncpa %s11, 0
    loop: start=0, step=1, limit=4
    $region2: #{attention_refinement_forward.1} parent=1 // loop_pre_header
      _
    $region3: #{attention_refinement_forward.1} parent=1 // loop_header
      %s14 = sphi 0, %s18
      %p15 = scmp.ge.s32.totalorder %s14, 4
      %s24 = sphi 0, %s26
      %s27 = sphi 0, %s24
      %s28 = sphi 0, %s27
      %s44 = sphi 0, %s28
      %s48 = sphi 0, %s48
      %s50 = sphi 0, %s48
      %s51 = sphi 0, %s50
      %s65 = sphi 0, %s51
      %s69 = sphi 0, %s69
      %s71 = sphi 0, %s69
      %s72 = sphi 0, %s71
      %s86 = sphi 0, %s72
      %s90 = sphi 0, %s90
      %s92 = sphi 0, %s90
      %s93 = sphi 0, %s92
      %s107 = sphi 0, %s93
      %s111 = sphi 0, %s111
      %s113 = sphi 0, %s111
      %s114 = sphi 0, %s113
      %s128 = sphi 0, %s114
      %s134 = sphi 0, %s136
      %s137 = sphi 0, %s134
      %s138 = sphi 0, %s137
      %s154 = sphi 0, %s138
    $region4: #{attention_refinement_forward.1} parent=1 // loop_header_branch
      %17 = sbr.rel (%p15) target = $region8
    $region5: #{attention_refinement_forward.1} parent=1 // loop_body
      %s19 = ssub.s32 %s14, 1
      %s20 = ssub.s32 %s14, 2
      %s21 = sadd.s32 %s14, 1
      %s22 = ssub.s32 %s14, %s21
      %p23 = scmp.eq.s32.totalorder %s22, 0
      %s25 = sadd.s32 %s24, 1
      %s26 = scalar_select %p23, %s24, %s25
      %p29 = pneg %p23
      %p30 = scmp.eq.s32.totalorder %s14, 1
      %p31 = por %p29, %p30
      %p32 = scmp.ne.s32.totalorder %s24, %s27
      %p33 = scmp.eq.s32.totalorder %s14, 0
      %p34 = por %p32, %p33
      %p35 = scmp.ne.s32.totalorder %s24, %s27
      %p36 = scmp.eq.s32.totalorder %s19, 1
      %p37 = por %p35, %p36
      %p38 = scmp.ne.s32.totalorder %s27, %s28
      %p39 = scmp.eq.s32.totalorder %s19, 0
      %p40 = por %p38, %p39
      %p41 = scmp.ne.s32.totalorder %s27, %s28
      %p42 = scmp.eq.s32.totalorder %s20, 1
      %p43 = por %p41, %p42
      %p45 = scmp.ne.s32.totalorder %s28, %s44
      %p46 = scmp.eq.s32.totalorder %s20, 0
      %p47 = por %p45, %p46
      %s49 = sadd.s32 %s48, 1
      %p52 = scmp.eq.s32.totalorder %s14, 1
      %p53 = scmp.ne.s32.totalorder %s48, %s50
      %p54 = scmp.eq.s32.totalorder %s14, 0
      %p55 = por %p53, %p54
      %p56 = scmp.ne.s32.totalorder %s48, %s50
      %p57 = scmp.eq.s32.totalorder %s19, 1
      %p58 = por %p56, %p57
      %p59 = scmp.ne.s32.totalorder %s50, %s51
      %p60 = scmp.eq.s32.totalorder %s19, 0
      %p61 = por %p59, %p60
      %p62 = scmp.ne.s32.totalorder %s50, %s51
      %p63 = scmp.eq.s32.totalorder %s20, 1
      %p64 = por %p62, %p63
      %p66 = scmp.ne.s32.totalorder %s51, %s65
      %p67 = scmp.eq.s32.totalorder %s20, 0
      %p68 = por %p66, %p67
      %s70 = sadd.s32 %s69, 1
      %p73 = scmp.eq.s32.totalorder %s14, 1
      %p74 = scmp.ne.s32.totalorder %s69, %s71
      %p75 = scmp.eq.s32.totalorder %s14, 0
      %p76 = por %p74, %p75
      %p77 = scmp.ne.s32.totalorder %s69, %s71
      %p78 = scmp.eq.s32.totalorder %s19, 1
      %p79 = por %p77, %p78
      %p80 = scmp.ne.s32.totalorder %s71, %s72
      %p81 = scmp.eq.s32.totalorder %s19, 0
      %p82 = por %p80, %p81
      %p83 = scmp.ne.s32.totalorder %s71, %s72
      %p84 = scmp.eq.s32.totalorder %s20, 1
      %p85 = por %p83, %p84
      %p87 = scmp.ne.s32.totalorder %s72, %s86
      %p88 = scmp.eq.s32.totalorder %s20, 0
      %p89 = por %p87, %p88
      %s91 = sadd.s32 %s90, 1
      %p94 = scmp.eq.s32.totalorder %s14, 1
      %p95 = scmp.ne.s32.totalorder %s90, %s92
      %p96 = scmp.eq.s32.totalorder %s14, 0
      %p97 = por %p95, %p96
      %p98 = scmp.ne.s32.totalorder %s90, %s92
      %p99 = scmp.eq.s32.totalorder %s19, 1
      %p100 = por %p98, %p99
      %p101 = scmp.ne.s32.totalorder %s92, %s93
      %p102 = scmp.eq.s32.totalorder %s19, 0
      %p103 = por %p101, %p102
      %p104 = scmp.ne.s32.totalorder %s92, %s93
      %p105 = scmp.eq.s32.totalorder %s20, 1
      %p106 = por %p104, %p105
      %p108 = scmp.ne.s32.totalorder %s93, %s107
      %p109 = scmp.eq.s32.totalorder %s20, 0
      %p110 = por %p108, %p109
      %s112 = sadd.s32 %s111, 1
      %p115 = scmp.eq.s32.totalorder %s14, 1
      %p116 = scmp.ne.s32.totalorder %s111, %s113
      %p117 = scmp.eq.s32.totalorder %s14, 0
      %p118 = por %p116, %p117
      %p119 = scmp.ne.s32.totalorder %s111, %s113
      %p120 = scmp.eq.s32.totalorder %s19, 1
      %p121 = por %p119, %p120
      %p122 = scmp.ne.s32.totalorder %s113, %s114
      %p123 = scmp.eq.s32.totalorder %s19, 0
      %p124 = por %p122, %p123
      %p125 = scmp.ne.s32.totalorder %s113, %s114
      %p126 = scmp.eq.s32.totalorder %s20, 1
      %p127 = por %p125, %p126
      %p129 = scmp.ne.s32.totalorder %s114, %s128
      %p130 = scmp.eq.s32.totalorder %s20, 0
      %p131 = por %p129, %p130
      %s132 = ssub.s32 %s14, %s21
      %p133 = scmp.eq.s32.totalorder %s132, 0
      %s135 = sadd.s32 %s134, 1
      %s136 = scalar_select %p133, %s134, %s135
      %p139 = pneg %p133
      %p140 = scmp.eq.s32.totalorder %s14, 1
      %p141 = por %p139, %p140
      %p142 = scmp.ne.s32.totalorder %s134, %s137
      %p143 = scmp.eq.s32.totalorder %s14, 0
      %p144 = por %p142, %p143
      %p145 = scmp.ne.s32.totalorder %s134, %s137
      %p146 = scmp.eq.s32.totalorder %s19, 1
      %p147 = por %p145, %p146
      %p148 = scmp.ne.s32.totalorder %s137, %s138
      %p149 = scmp.eq.s32.totalorder %s19, 0
      %p150 = por %p148, %p149
      %p151 = scmp.ne.s32.totalorder %s137, %s138
      %p152 = scmp.eq.s32.totalorder %s20, 1
      %p153 = por %p151, %p152
      %p155 = scmp.ne.s32.totalorder %s138, %s154
      %p156 = scmp.eq.s32.totalorder %s20, 0
      %p157 = por %p155, %p156
      %p158 = scmp.le.s32.totalorder 1, %s14
      %p159 = scmp.lt.s32.totalorder %s14, 3
      %p160 = pnand %p158, %p159
      %p161 = pneg %p160
      // Predicated region
      $region9: #{attention_refinement_forward.1} parent=5 // pred_check
        _
      $region10: #{attention_refinement_forward.1} parent=5 // pred_check_branch
        %163 = sbr.rel (%p160) target = $region12
      $region11: #{attention_refinement_forward.1} parent=5 // pred_region
        %s164 = ssub.s32 %s14, 1
        // Predicated region
        $region13: #{attention_refinement_forward.1} parent=11 // pred_check
          %p165 = pneg %p61
        $region14: #{attention_refinement_forward.1} parent=11 // pred_check_branch
          %167 = sbr.rel (%p165) target = $region16
        $region15: #{attention_refinement_forward.1} parent=11 // pred_region
          _
        $region16: #{attention_refinement_forward.1} parent=11 // pred_fallthru
          _
        // Predicated region
        $region17: #{attention_refinement_forward.1} parent=11 // pred_check
          %p168 = pneg %p82
        $region18: #{attention_refinement_forward.1} parent=11 // pred_check_branch
          %170 = sbr.rel (%p168) target = $region20
        $region19: #{attention_refinement_forward.1} parent=11 // pred_region
          _
        $region20: #{attention_refinement_forward.1} parent=11 // pred_fallthru
          _
        // Predicated region
        $region21: #{attention_refinement_forward.1} parent=11 // pred_check
          %p171 = pneg %p103
        $region22: #{attention_refinement_forward.1} parent=11 // pred_check_branch
          %173 = sbr.rel (%p171) target = $region24
        $region23: #{attention_refinement_forward.1} parent=11 // pred_region
          _
        $region24: #{attention_refinement_forward.1} parent=11 // pred_fallthru
          _
        // Predicated region
        $region25: #{attention_refinement_forward.1} parent=11 // pred_check
          %p174 = pneg %p124
        $region26: #{attention_refinement_forward.1} parent=11 // pred_check_branch
          %176 = sbr.rel (%p174) target = $region28
        $region27: #{attention_refinement_forward.1} parent=11 // pred_region
          _
        $region28: #{attention_refinement_forward.1} parent=11 // pred_fallthru
          _
      $region12: #{attention_refinement_forward.1} parent=5 // pred_fallthru
        _
      %p177 = scmp.lt.s32.totalorder %s14, 2
      // Predicated region
      $region29: #{attention_refinement_forward.1} parent=5 // pred_check
        %p178 = pneg %p177
      $region30: #{attention_refinement_forward.1} parent=5 // pred_check_branch
        %180 = sbr.rel (%p178) target = $region32
      $region31: #{attention_refinement_forward.1} parent=5 // pred_region
        // Predicated region
        $region33: #{attention_refinement_forward.1} parent=31 // pred_check
          %p181 = pneg %p34
        $region34: #{attention_refinement_forward.1} parent=31 // pred_check_branch
          %183 = sbr.rel (%p181) target = $region36
        $region35: #{attention_refinement_forward.1} parent=31 // pred_region
          %p184 = scmp.lt.s32.totalorder %s14, 1
          %s185 = scalar_select %p184, %s14, 1
          %s186 = smul.addr %s185, 36
          %s187 = smul.addr %s186, 4
          %s188 = scalar_lea.vmem %s0, %s187
        $region36: #{attention_refinement_forward.1} parent=31 // pred_fallthru
          _
      $region32: #{attention_refinement_forward.1} parent=5 // pred_fallthru
        _
      %p189 = scmp.le.s32.totalorder 1, %s14
      %p190 = scmp.lt.s32.totalorder %s14, 3
      %p191 = pnand %p189, %p190
      %p192 = pneg %p191
      // Predicated region
      $region37: #{attention_refinement_forward.1} parent=5 // pred_check
        _
      $region38: #{attention_refinement_forward.1} parent=5 // pred_check_branch
        %194 = sbr.rel (%p191) target = $region40
      $region39: #{attention_refinement_forward.1} parent=5 // pred_region
        %s195 = ssub.s32 %s14, 1
        %p196 = scmp.lt.s32.totalorder %s19, 1
        %s197 = scalar_select %p196, %s19, 1
        %s198 = smul.addr %s197, 36
        %s199 = smul.addr %s198, 4
        %s200 = scalar_lea.vmem %s0, %s199
        %p201 = pneg %p40
        %p202 = pneg %p37
        %p203 = pneg %p61
        %p204 = pneg %p58
        %p205 = pneg %p82
        %p206 = pneg %p79
        %p207 = pneg %p103
        %p208 = pneg %p100
        %p209 = pneg %p124
        %p210 = pneg %p121
        %p211 = pneg %p150
        %p212 = pneg %p147
        %s213 = sand.u32 %s137, 1
        %s214 = scalar_lea.sflag [#allocation3], %s213
        %s215 = sand.u32 %s137, 1
        %s216 = smul.addr %s215, 256
        %s217 = scalar_lea.vmem [#allocation2], %s216
        %p218 = scmp.lt.s32.totalorder %s19, 1
        %s219 = scalar_select %p218, %s19, 1
        %s220 = smul.addr %s219, 36
        %s221 = smul.addr %s220, 4
        %s222 = scalar_lea.vmem %s0, %s221
        %v224 = vld [vmem:[%s2] sm:$0x1]
        %v225 = vld [vmem:[%s2 + $0x1] sm:$0x1]
        %v226 = vld [vmem:[%s222] sm:$0xf]
        %v227 = vld [vmem:[%s222 + $0x4] sm:$0xf]
        %v228 = vld [vmem:[%s222 + $0x8] sm:$0xf]
        %v229 = vld [vmem:[%s222 + $0xc] sm:$0xf]
        %v230 = vld [vmem:[%s222 + $0x10] sm:$0xf]
        %v231 = vld [vmem:[%s222 + $0x14] sm:$0xf]
        %v232 = vld [vmem:[%s222 + $0x18] sm:$0xf]
        %v233 = vld [vmem:[%s222 + $0x1c] sm:$0xf]
        %v234 = vld [vmem:[%s222 + $0x20] sm:$0xf]
        %v235 = vld [vmem:[%s222 + $0x24] sm:$0xf]
        %v236 = vld [vmem:[%s222 + $0x28] sm:$0xf]
        %v237 = vld [vmem:[%s222 + $0x2c] sm:$0xf]
        %v238 = vld [vmem:[%s222 + $0x30] sm:$0xf]
        %v239 = vld [vmem:[%s222 + $0x34] sm:$0xf]
        %v240 = vld [vmem:[%s222 + $0x38] sm:$0xf]
        %v241 = vld [vmem:[%s222 + $0x3c] sm:$0xf]
        %v242 = vld [vmem:[%s222 + $0x40] sm:$0xf]
        %v243 = vld [vmem:[%s222 + $0x44] sm:$0xf]
        %v244 = vld [vmem:[%s222 + $0x48] sm:$0xf]
        %v245 = vld [vmem:[%s222 + $0x4c] sm:$0xf]
        %v246 = vld [vmem:[%s222 + $0x50] sm:$0xf]
        %v247 = vld [vmem:[%s222 + $0x54] sm:$0xf]
        %v248 = vld [vmem:[%s222 + $0x58] sm:$0xf]
        %v249 = vld [vmem:[%s222 + $0x5c] sm:$0xf]
        %v250 = vld [vmem:[%s222 + $0x60] sm:$0xf]
        %v251 = vld [vmem:[%s222 + $0x64] sm:$0xf]
        %v252 = vld [vmem:[%s222 + $0x68] sm:$0xf]
        %v253 = vld [vmem:[%s222 + $0x6c] sm:$0xf]
        %v254 = vld [vmem:[%s222 + $0x70] sm:$0xf]
        %v255 = vld [vmem:[%s222 + $0x74] sm:$0xf]
        %v256 = vld [vmem:[%s222 + $0x78] sm:$0xf]
        %v257 = vld [vmem:[%s222 + $0x7c] sm:$0xf]
        %v258 = vld [vmem:[%s1] sm:$0xf]
        %v259 = vld [vmem:[%s1 + $0x4] sm:$0xf]
        %v260 = vld [vmem:[%s1 + $0x8] sm:$0xf]
        %v261 = vld [vmem:[%s1 + $0xc] sm:$0xf]
        %v262 = vld [vmem:[%s1 + $0x10] sm:$0xf]
        %v263 = vld [vmem:[%s1 + $0x14] sm:$0xf]
        %v264 = vld [vmem:[%s1 + $0x18] sm:$0xf]
        %v265 = vld [vmem:[%s1 + $0x1c] sm:$0xf]
        %v266 = vld [vmem:[%s1 + $0x20] sm:$0xf]
        %v267 = vld [vmem:[%s1 + $0x24] sm:$0xf]
        %v268 = vld [vmem:[%s1 + $0x28] sm:$0xf]
        %v269 = vld [vmem:[%s1 + $0x2c] sm:$0xf]
        %s270 = sadd.s32 0, 16
        %s271 = sshra.s32 %s270, 3
        %s272 = sand.u32 %s270, 7
        %s273 = smul.addr %s271, 4
        %s274 = scalar_lea.vmem %s222, %s273
        %v275 = vld [vmem:[%s274] sm:$0xf]
        %v276 = vld [vmem:[%s274 + $0x4] sm:$0xf]
        %v277 = vld [vmem:[%s274 + $0x8] sm:$0xf]
        %v278 = vld [vmem:[%s274 + $0xc] sm:$0xf]
        %v279 = vld [vmem:[%s274 + $0x10] sm:$0xf]
        %v280 = vld [vmem:[%s274 + $0x14] sm:$0xf]
        %v281 = vld [vmem:[%s274 + $0x18] sm:$0xf]
        %v282 = vld [vmem:[%s274 + $0x1c] sm:$0xf]
        %v283 = vld [vmem:[%s274 + $0x20] sm:$0xf]
        %v284 = vld [vmem:[%s274 + $0x24] sm:$0xf]
        %v285 = vld [vmem:[%s274 + $0x28] sm:$0xf]
        %v286 = vld [vmem:[%s274 + $0x2c] sm:$0xf]
        %v287 = vld [vmem:[%s274 + $0x30] sm:$0xf]
        %v288 = vld [vmem:[%s274 + $0x34] sm:$0xf]
        %v289 = vld [vmem:[%s274 + $0x38] sm:$0xf]
        %v290 = vld [vmem:[%s274 + $0x3c] sm:$0xf]
        %v291 = vld [vmem:[%s274 + $0x40] sm:$0xf]
        %v292 = vld [vmem:[%s274 + $0x44] sm:$0xf]
        %v293 = vld [vmem:[%s274 + $0x48] sm:$0xf]
        %v294 = vld [vmem:[%s274 + $0x4c] sm:$0xf]
        %v295 = vld [vmem:[%s274 + $0x50] sm:$0xf]
        %v296 = vld [vmem:[%s274 + $0x54] sm:$0xf]
        %v297 = vld [vmem:[%s274 + $0x58] sm:$0xf]
        %v298 = vld [vmem:[%s274 + $0x5c] sm:$0xf]
        %v299 = vld [vmem:[%s274 + $0x60] sm:$0xf]
        %v300 = vld [vmem:[%s274 + $0x64] sm:$0xf]
        %v301 = vld [vmem:[%s274 + $0x68] sm:$0xf]
        %v302 = vld [vmem:[%s274 + $0x6c] sm:$0xf]
        %v303 = vld [vmem:[%s274 + $0x70] sm:$0xf]
        %v304 = vld [vmem:[%s274 + $0x74] sm:$0xf]
        %v305 = vld [vmem:[%s274 + $0x78] sm:$0xf]
        %v306 = vld [vmem:[%s274 + $0x7c] sm:$0xf]
        %s307 = scalar_lea.vmem %s1, 48
        %v308 = vld [vmem:[%s307] sm:$0xf]
        %v309 = vld [vmem:[%s307 + $0x4] sm:$0xf]
        %v310 = vld [vmem:[%s307 + $0x8] sm:$0xf]
        %v311 = vld [vmem:[%s307 + $0xc] sm:$0xf]
        %v312 = vld [vmem:[%s307 + $0x10] sm:$0xf]
        %v313 = vld [vmem:[%s307 + $0x14] sm:$0xf]
        %v314 = vld [vmem:[%s307 + $0x18] sm:$0xf]
        %v315 = vld [vmem:[%s307 + $0x1c] sm:$0xf]
        %v316 = vld [vmem:[%s307 + $0x20] sm:$0xf]
        %v317 = vld [vmem:[%s307 + $0x24] sm:$0xf]
        %v318 = vld [vmem:[%s307 + $0x28] sm:$0xf]
        %v319 = vld [vmem:[%s307 + $0x2c] sm:$0xf]
        %v352 = vunpack.c.l.b16 %v275
        %v353 = vunpack.c.l.b16 %v276
        %v354 = vunpack.c.l.b16 %v277
        %v355 = vunpack.c.l.b16 %v278
        %v356 = vunpack.c.l.b16 %v279
        %v357 = vunpack.c.l.b16 %v280
        %v358 = vunpack.c.l.b16 %v281
        %v359 = vunpack.c.l.b16 %v282
        %v360 = vunpack.c.l.b16 %v283
        %v361 = vunpack.c.l.b16 %v284
        %v362 = vunpack.c.l.b16 %v285
        %v363 = vunpack.c.l.b16 %v286
        %v364 = vunpack.c.l.b16 %v287
        %v365 = vunpack.c.l.b16 %v288
        %v366 = vunpack.c.l.b16 %v289
        %v367 = vunpack.c.l.b16 %v290
        %v368 = vunpack.c.l.b16 %v291
        %v369 = vunpack.c.l.b16 %v292
        %v370 = vunpack.c.l.b16 %v293
        %v371 = vunpack.c.l.b16 %v294
        %v372 = vunpack.c.l.b16 %v295
        %v373 = vunpack.c.l.b16 %v296
        %v374 = vunpack.c.l.b16 %v297
        %v375 = vunpack.c.l.b16 %v298
        %v376 = vunpack.c.l.b16 %v299
        %v377 = vunpack.c.l.b16 %v300
        %v378 = vunpack.c.l.b16 %v301
        %v379 = vunpack.c.l.b16 %v302
        %v380 = vunpack.c.l.b16 %v303
        %v381 = vunpack.c.l.b16 %v304
        %v382 = vunpack.c.l.b16 %v305
        %v383 = vunpack.c.l.b16 %v306
        %v384 = vpack.c.b16 %v353, %v352
        %v385 = vpack.c.b16 %v355, %v354
        %v386 = vpack.c.b16 %v357, %v356
        %v387 = vpack.c.b16 %v359, %v358
        %v388 = vpack.c.b16 %v361, %v360
        %v389 = vpack.c.b16 %v363, %v362
        %v390 = vpack.c.b16 %v365, %v364
        %v391 = vpack.c.b16 %v367, %v366
        %v392 = vpack.c.b16 %v369, %v368
        %v393 = vpack.c.b16 %v371, %v370
        %v394 = vpack.c.b16 %v373, %v372
        %v395 = vpack.c.b16 %v375, %v374
        %v396 = vpack.c.b16 %v377, %v376
        %v397 = vpack.c.b16 %v379, %v378
        %v398 = vpack.c.b16 %v381, %v380
        %v399 = vpack.c.b16 %v383, %v382
        %v412 = vunpack.c.l.b16 %v308
        %v413 = vunpack.c.l.b16 %v309
        %v414 = vunpack.c.l.b16 %v310
        %v415 = vunpack.c.l.b16 %v311
        %v416 = vunpack.c.l.b16 %v312
        %v417 = vunpack.c.l.b16 %v313
        %v418 = vunpack.c.l.b16 %v314
        %v419 = vunpack.c.l.b16 %v315
        %v420 = vunpack.c.l.b16 %v316
        %v421 = vunpack.c.l.b16 %v317
        %v422 = vunpack.c.l.b16 %v318
        %v423 = vunpack.c.l.b16 %v319
        %v424 = vpack.c.b16 %v413, %v412
        %v425 = vpack.c.b16 %v415, %v414
        %v426 = vpack.c.b16 %v417, %v416
        %v427 = vpack.c.b16 %v419, %v418
        %v428 = vpack.c.b16 %v421, %v420
        %v429 = vpack.c.b16 %v423, %v422
        %vm436 = vcmask 785408
        %v438 = vsel %vm436, %v384, 0
        %v441 = vsel %vm436, %v385, 0
        %v444 = vsel %vm436, %v386, 0
        %v447 = vsel %vm436, %v387, 0
        %v450 = vsel %vm436, %v388, 0
        %v453 = vsel %vm436, %v389, 0
        %v456 = vsel %vm436, %v390, 0
        %v459 = vsel %vm436, %v391, 0
        %v462 = vsel %vm436, %v392, 0
        %v465 = vsel %vm436, %v393, 0
        %v468 = vsel %vm436, %v394, 0
        %v471 = vsel %vm436, %v395, 0
        %v474 = vsel %vm436, %v396, 0
        %v477 = vsel %vm436, %v397, 0
        %v480 = vsel %vm436, %v398, 0
        %v483 = vsel %vm436, %v399, 0
        %485 = vmatprep.subr.bf16.mxu0 0
        %486 = vmatpush1.bf16.msra.mxu0 %v424
        %487 = vmatprep.subr.bf16.mxu0 0
        %488 = vmatpush1.bf16.msra.mxu0 %v425
        %489 = vmatprep.subr.bf16.mxu0 0
        %490 = vmatpush1.bf16.msra.mxu0 %v426
        %491 = vmatprep.subr.bf16.mxu0 0
        %492 = vmatpush1.bf16.msra.mxu0 %v427
        %493 = vmatprep.subr.bf16.mxu0 0
        %494 = vmatpush1.bf16.msra.mxu0 %v428
        %495 = vmatprep.subr.bf16.mxu0 0
        %496 = vmatpush1.bf16.msra.mxu0 %v429
        %497 = vmatprep.subr.bf16.mxu0 0
        %498 = vmatpush1.bf16.msra.mxu0 0
        %499 = vmatprep.subr.bf16.mxu0 0
        %500 = vmatpush1.bf16.msra.mxu0 0
        %501 = vmatprep.subr.bf16.mxu0 0
        %502 = vmatpush1.bf16.msra.mxu0 0
        %503 = vmatprep.subr.bf16.mxu0 0
        %504 = vmatpush1.bf16.msra.mxu0 0
        %505 = vmatprep.subr.bf16.mxu0 0
        %506 = vmatpush1.bf16.msra.mxu0 0
        %507 = vmatprep.subr.bf16.mxu0 0
        %508 = vmatpush1.bf16.msra.mxu0 0
        %509 = vmatprep.subr.bf16.mxu0 0
        %510 = vmatpush1.bf16.msra.mxu0 0
        %511 = vmatprep.subr.bf16.mxu0 0
        %512 = vmatpush1.bf16.msra.mxu0 0
        %513 = vmatprep.subr.bf16.mxu0 0
        %514 = vmatpush1.bf16.msra.mxu0 0
        %515 = vmatprep.subr.bf16.mxu0 0
        %516 = vmatpush1.bf16.msra.mxu0 0
        %517 = vmatprep.mubr.bf16.mxu0 0
        %518 = vmatmul.mubr.bf16.gmra.mrb[0].mxu0 %v438
        %v519 = vpop.f32.mrb[0].mxu0
        %v520 = vadd.f32 0.0, %v519
        %v521 = vpop.f32.mrb[0].mxu0
        %v522 = vpop.f32.mrb[0].mxu0
        %v523 = vadd.f32 0.0, %v522
        %v524 = vpop.f32.mrb[0].mxu0
        %525 = vmatprep.mubr.bf16.mxu0 0
        %526 = vmatmul.mubr.bf16.gmra.mrb[0].mxu0 %v441
        %v527 = vpop.f32.mrb[0].mxu0
        %v528 = vadd.f32 0.0, %v527
        %v529 = vpop.f32.mrb[0].mxu0
        %v530 = vpop.f32.mrb[0].mxu0
        %v531 = vadd.f32 0.0, %v530
        %v532 = vpop.f32.mrb[0].mxu0
        %533 = vmatprep.mubr.bf16.mxu0 0
        %534 = vmatmul.mubr.bf16.gmra.mrb[0].mxu0 %v444
        %v535 = vpop.f32.mrb[0].mxu0
        %v536 = vadd.f32 0.0, %v535
        %v537 = vpop.f32.mrb[0].mxu0
        %v538 = vpop.f32.mrb[0].mxu0
        %v539 = vadd.f32 0.0, %v538
        %v540 = vpop.f32.mrb[0].mxu0
        %541 = vmatprep.mubr.bf16.mxu0 0
        %542 = vmatmul.mubr.bf16.gmra.mrb[0].mxu0 %v447
        %v543 = vpop.f32.mrb[0].mxu0
        %v544 = vadd.f32 0.0, %v543
        %v545 = vpop.f32.mrb[0].mxu0
        %v546 = vpop.f32.mrb[0].mxu0
        %v547 = vadd.f32 0.0, %v546
        %v548 = vpop.f32.mrb[0].mxu0
        %549 = vmatprep.mubr.bf16.mxu0 0
        %550 = vmatmul.mubr.bf16.gmra.mrb[0].mxu0 %v450
        %v551 = vpop.f32.mrb[0].mxu0
        %v552 = vadd.f32 0.0, %v551
        %v553 = vpop.f32.mrb[0].mxu0
        %v554 = vpop.f32.mrb[0].mxu0
        %v555 = vadd.f32 0.0, %v554
        %v556 = vpop.f32.mrb[0].mxu0
        %557 = vmatprep.mubr.bf16.mxu0 0
        %558 = vmatmul.mubr.bf16.gmra.mrb[0].mxu0 %v453
        %v559 = vpop.f32.mrb[0].mxu0
        %v560 = vadd.f32 0.0, %v559
        %v561 = vpop.f32.mrb[0].mxu0
        %v562 = vpop.f32.mrb[0].mxu0
        %v563 = vadd.f32 0.0, %v562
        %v564 = vpop.f32.mrb[0].mxu0
        %565 = vmatprep.mubr.bf16.mxu0 0
        %566 = vmatmul.mubr.bf16.gmra.mrb[0].mxu0 %v456
        %v567 = vpop.f32.mrb[0].mxu0
        %v568 = vadd.f32 0.0, %v567
        %v569 = vpop.f32.mrb[0].mxu0
        %v570 = vpop.f32.mrb[0].mxu0
        %v571 = vadd.f32 0.0, %v570
        %v572 = vpop.f32.mrb[0].mxu0
        %573 = vmatprep.mubr.bf16.mxu0 0
        %574 = vmatmul.mubr.bf16.gmra.mrb[0].mxu0 %v459
        %v575 = vpop.f32.mrb[0].mxu0
        %v576 = vadd.f32 0.0, %v575
        %v577 = vpop.f32.mrb[0].mxu0
        %v578 = vpop.f32.mrb[0].mxu0
        %v579 = vadd.f32 0.0, %v578
        %v580 = vpop.f32.mrb[0].mxu0
        %581 = vmatprep.mubr.bf16.mxu0 0
        %582 = vmatmul.mubr.bf16.gmra.mrb[0].mxu0 %v462
        %v583 = vpop.f32.mrb[0].mxu0
        %v584 = vadd.f32 0.0, %v583
        %v585 = vpop.f32.mrb[0].mxu0
        %v586 = vpop.f32.mrb[0].mxu0
        %v587 = vadd.f32 0.0, %v586
        %v588 = vpop.f32.mrb[0].mxu0
        %589 = vmatprep.mubr.bf16.mxu0 0
        %590 = vmatmul.mubr.bf16.gmra.mrb[0].mxu0 %v465
        %v591 = vpop.f32.mrb[0].mxu0
        %v592 = vadd.f32 0.0, %v591
        %v593 = vpop.f32.mrb[0].mxu0
        %v594 = vpop.f32.mrb[0].mxu0
        %v595 = vadd.f32 0.0, %v594
        %v596 = vpop.f32.mrb[0].mxu0
        %597 = vmatprep.mubr.bf16.mxu0 0
        %598 = vmatmul.mubr.bf16.gmra.mrb[0].mxu0 %v468
        %v599 = vpop.f32.mrb[0].mxu0
        %v600 = vadd.f32 0.0, %v599
        %v601 = vpop.f32.mrb[0].mxu0
        %v602 = vpop.f32.mrb[0].mxu0
        %v603 = vadd.f32 0.0, %v602
        %v604 = vpop.f32.mrb[0].mxu0
        %605 = vmatprep.mubr.bf16.mxu0 0
        %606 = vmatmul.mubr.bf16.gmra.mrb[0].mxu0 %v471
        %v607 = vpop.f32.mrb[0].mxu0
        %v608 = vadd.f32 0.0, %v607
        %v609 = vpop.f32.mrb[0].mxu0
        %v610 = vpop.f32.mrb[0].mxu0
        %v611 = vadd.f32 0.0, %v610
        %v612 = vpop.f32.mrb[0].mxu0
        %613 = vmatprep.mubr.bf16.mxu0 0
        %614 = vmatmul.mubr.bf16.gmra.mrb[0].mxu0 %v474
        %v615 = vpop.f32.mrb[0].mxu0
        %v616 = vadd.f32 0.0, %v615
        %v617 = vpop.f32.mrb[0].mxu0
        %v618 = vpop.f32.mrb[0].mxu0
        %v619 = vadd.f32 0.0, %v618
        %v620 = vpop.f32.mrb[0].mxu0
        %621 = vmatprep.mubr.bf16.mxu0 0
        %622 = vmatmul.mubr.bf16.gmra.mrb[0].mxu0 %v477
        %v623 = vpop.f32.mrb[0].mxu0
        %v624 = vadd.f32 0.0, %v623
        %v625 = vpop.f32.mrb[0].mxu0
        %v626 = vpop.f32.mrb[0].mxu0
        %v627 = vadd.f32 0.0, %v626
        %v628 = vpop.f32.mrb[0].mxu0
        %629 = vmatprep.mubr.bf16.mxu0 0
        %630 = vmatmul.mubr.bf16.gmra.mrb[0].mxu0 %v480
        %v631 = vpop.f32.mrb[0].mxu0
        %v632 = vadd.f32 0.0, %v631
        %v633 = vpop.f32.mrb[0].mxu0
        %v634 = vpop.f32.mrb[0].mxu0
        %v635 = vadd.f32 0.0, %v634
        %v636 = vpop.f32.mrb[0].mxu0
        %637 = vmatprep.mubr.bf16.mxu0 0
        %638 = vmatmul.mubr.bf16.gmra.mrb[0].mxu0 %v483
        %v639 = vpop.f32.mrb[0].mxu0
        %v640 = vadd.f32 0.0, %v639
        %v641 = vpop.f32.mrb[0].mxu0
        %v642 = vpop.f32.mrb[0].mxu0
        %v643 = vadd.f32 0.0, %v642
        %v644 = vpop.f32.mrb[0].mxu0
        %645 = vdwg.mxu0
        %v678 = vunpack.c.l.b16 %v226
        %v679 = vunpack.c.l.b16 %v227
        %v680 = vunpack.c.l.b16 %v228
        %v681 = vunpack.c.l.b16 %v229
        %v682 = vunpack.c.l.b16 %v230
        %v683 = vunpack.c.l.b16 %v231
        %v684 = vunpack.c.l.b16 %v232
        %v685 = vunpack.c.l.b16 %v233
        %v686 = vunpack.c.l.b16 %v234
        %v687 = vunpack.c.l.b16 %v235
        %v688 = vunpack.c.l.b16 %v236
        %v689 = vunpack.c.l.b16 %v237
        %v690 = vunpack.c.l.b16 %v238
        %v691 = vunpack.c.l.b16 %v239
        %v692 = vunpack.c.l.b16 %v240
        %v693 = vunpack.c.l.b16 %v241
        %v694 = vunpack.c.l.b16 %v242
        %v695 = vunpack.c.l.b16 %v243
        %v696 = vunpack.c.l.b16 %v244
        %v697 = vunpack.c.l.b16 %v245
        %v698 = vunpack.c.l.b16 %v246
        %v699 = vunpack.c.l.b16 %v247
        %v700 = vunpack.c.l.b16 %v248
        %v701 = vunpack.c.l.b16 %v249
        %v702 = vunpack.c.l.b16 %v250
        %v703 = vunpack.c.l.b16 %v251
        %v704 = vunpack.c.l.b16 %v252
        %v705 = vunpack.c.l.b16 %v253
        %v706 = vunpack.c.l.b16 %v254
        %v707 = vunpack.c.l.b16 %v255
        %v708 = vunpack.c.l.b16 %v256
        %v709 = vunpack.c.l.b16 %v257
        %v710 = vpack.c.b16 %v679, %v678
        %v711 = vpack.c.b16 %v681, %v680
        %v712 = vpack.c.b16 %v683, %v682
        %v713 = vpack.c.b16 %v685, %v684
        %v714 = vpack.c.b16 %v687, %v686
        %v715 = vpack.c.b16 %v689, %v688
        %v716 = vpack.c.b16 %v691, %v690
        %v717 = vpack.c.b16 %v693, %v692
        %v718 = vpack.c.b16 %v695, %v694
        %v719 = vpack.c.b16 %v697, %v696
        %v720 = vpack.c.b16 %v699, %v698
        %v721 = vpack.c.b16 %v701, %v700
        %v722 = vpack.c.b16 %v703, %v702
        %v723 = vpack.c.b16 %v705, %v704
        %v724 = vpack.c.b16 %v707, %v706
        %v725 = vpack.c.b16 %v709, %v708
        %v738 = vunpack.c.l.b16 %v258
        %v739 = vunpack.c.l.b16 %v259
        %v740 = vunpack.c.l.b16 %v260
        %v741 = vunpack.c.l.b16 %v261
        %v742 = vunpack.c.l.b16 %v262
        %v743 = vunpack.c.l.b16 %v263
        %v744 = vunpack.c.l.b16 %v264
        %v745 = vunpack.c.l.b16 %v265
        %v746 = vunpack.c.l.b16 %v266
        %v747 = vunpack.c.l.b16 %v267
        %v748 = vunpack.c.l.b16 %v268
        %v749 = vunpack.c.l.b16 %v269
        %v750 = vpack.c.b16 %v739, %v738
        %v751 = vpack.c.b16 %v741, %v740
        %v752 = vpack.c.b16 %v743, %v742
        %v753 = vpack.c.b16 %v745, %v744
        %v754 = vpack.c.b16 %v747, %v746
        %v755 = vpack.c.b16 %v749, %v748
        %v763 = vsel %vm436, %v710, 0
        %v766 = vsel %vm436, %v711, 0
        %v769 = vsel %vm436, %v712, 0
        %v772 = vsel %vm436, %v713, 0
        %v775 = vsel %vm436, %v714, 0
        %v778 = vsel %vm436, %v715, 0
        %v781 = vsel %vm436, %v716, 0
        %v784 = vsel %vm436, %v717, 0
        %v787 = vsel %vm436, %v718, 0
        %v790 = vsel %vm436, %v719, 0
        %v793 = vsel %vm436, %v720, 0
        %v796 = vsel %vm436, %v721, 0
        %v799 = vsel %vm436, %v722, 0
        %v802 = vsel %vm436, %v723, 0
        %v805 = vsel %vm436, %v724, 0
        %v808 = vsel %vm436, %v725, 0
        %810 = vmatprep.subr.bf16.mxu0 0
        %811 = vmatpush1.bf16.msra.mxu0 %v750
        %812 = vmatprep.subr.bf16.mxu0 0
        %813 = vmatpush1.bf16.msra.mxu0 %v751
        %814 = vmatprep.subr.bf16.mxu0 0
        %815 = vmatpush1.bf16.msra.mxu0 %v752
        %816 = vmatprep.subr.bf16.mxu0 0
        %817 = vmatpush1.bf16.msra.mxu0 %v753
        %818 = vmatprep.subr.bf16.mxu0 0
        %819 = vmatpush1.bf16.msra.mxu0 %v754
        %820 = vmatprep.subr.bf16.mxu0 0
        %821 = vmatpush1.bf16.msra.mxu0 %v755
        %822 = vmatprep.subr.bf16.mxu0 0
        %823 = vmatpush1.bf16.msra.mxu0 0
        %824 = vmatprep.subr.bf16.mxu0 0
        %825 = vmatpush1.bf16.msra.mxu0 0
        %826 = vmatprep.subr.bf16.mxu0 0
        %827 = vmatpush1.bf16.msra.mxu0 0
        %828 = vmatprep.subr.bf16.mxu0 0
        %829 = vmatpush1.bf16.msra.mxu0 0
        %830 = vmatprep.subr.bf16.mxu0 0
        %831 = vmatpush1.bf16.msra.mxu0 0
        %832 = vmatprep.subr.bf16.mxu0 0
        %833 = vmatpush1.bf16.msra.mxu0 0
        %834 = vmatprep.subr.bf16.mxu0 0
        %835 = vmatpush1.bf16.msra.mxu0 0
        %836 = vmatprep.subr.bf16.mxu0 0
        %837 = vmatpush1.bf16.msra.mxu0 0
        %838 = vmatprep.subr.bf16.mxu0 0
        %839 = vmatpush1.bf16.msra.mxu0 0
        %840 = vmatprep.subr.bf16.mxu0 0
        %841 = vmatpush1.bf16.msra.mxu0 0
        %842 = vmatprep.mubr.bf16.mxu0 0
        %843 = vmatmul.mubr.bf16.gmra.mrb[0].mxu0 %v763
        %v844 = vpop.f32.mrb[0].mxu0
        %v845 = vadd.f32 %v520, %v844
        %v846 = vpop.f32.mrb[0].mxu0
        %v847 = vpop.f32.mrb[0].mxu0
        %v848 = vadd.f32 %v523, %v847
        %v849 = vpop.f32.mrb[0].mxu0
        %850 = vmatprep.mubr.bf16.mxu0 0
        %851 = vmatmul.mubr.bf16.gmra.mrb[0].mxu0 %v766
        %v852 = vpop.f32.mrb[0].mxu0
        %v853 = vadd.f32 %v528, %v852
        %v854 = vpop.f32.mrb[0].mxu0
        %v855 = vpop.f32.mrb[0].mxu0
        %v856 = vadd.f32 %v531, %v855
        %v857 = vpop.f32.mrb[0].mxu0
        %858 = vmatprep.mubr.bf16.mxu0 0
        %859 = vmatmul.mubr.bf16.gmra.mrb[0].mxu0 %v769
        %v860 = vpop.f32.mrb[0].mxu0
        %v861 = vadd.f32 %v536, %v860
        %v862 = vpop.f32.mrb[0].mxu0
        %v863 = vpop.f32.mrb[0].mxu0
        %v864 = vadd.f32 %v539, %v863
        %v865 = vpop.f32.mrb[0].mxu0
        %866 = vmatprep.mubr.bf16.mxu0 0
        %867 = vmatmul.mubr.bf16.gmra.mrb[0].mxu0 %v772
        %v868 = vpop.f32.mrb[0].mxu0
        %v869 = vadd.f32 %v544, %v868
        %v870 = vpop.f32.mrb[0].mxu0
        %v871 = vpop.f32.mrb[0].mxu0
        %v872 = vadd.f32 %v547, %v871
        %v873 = vpop.f32.mrb[0].mxu0
        %874 = vmatprep.mubr.bf16.mxu0 0
        %875 = vmatmul.mubr.bf16.gmra.mrb[0].mxu0 %v775
        %v876 = vpop.f32.mrb[0].mxu0
        %v877 = vadd.f32 %v552, %v876
        %v878 = vpop.f32.mrb[0].mxu0
        %v879 = vpop.f32.mrb[0].mxu0
        %v880 = vadd.f32 %v555, %v879
        %v881 = vpop.f32.mrb[0].mxu0
        %882 = vmatprep.mubr.bf16.mxu0 0
        %883 = vmatmul.mubr.bf16.gmra.mrb[0].mxu0 %v778
        %v884 = vpop.f32.mrb[0].mxu0
        %v885 = vadd.f32 %v560, %v884
        %v886 = vpop.f32.mrb[0].mxu0
        %v887 = vpop.f32.mrb[0].mxu0
        %v888 = vadd.f32 %v563, %v887
        %v889 = vpop.f32.mrb[0].mxu0
        %890 = vmatprep.mubr.bf16.mxu0 0
        %891 = vmatmul.mubr.bf16.gmra.mrb[0].mxu0 %v781
        %v892 = vpop.f32.mrb[0].mxu0
        %v893 = vadd.f32 %v568, %v892
        %v894 = vpop.f32.mrb[0].mxu0
        %v895 = vpop.f32.mrb[0].mxu0
        %v896 = vadd.f32 %v571, %v895
        %v897 = vpop.f32.mrb[0].mxu0
        %898 = vmatprep.mubr.bf16.mxu0 0
        %899 = vmatmul.mubr.bf16.gmra.mrb[0].mxu0 %v784
        %v900 = vpop.f32.mrb[0].mxu0
        %v901 = vadd.f32 %v576, %v900
        %v902 = vpop.f32.mrb[0].mxu0
        %v903 = vpop.f32.mrb[0].mxu0
        %v904 = vadd.f32 %v579, %v903
        %v905 = vpop.f32.mrb[0].mxu0
        %906 = vmatprep.mubr.bf16.mxu0 0
        %907 = vmatmul.mubr.bf16.gmra.mrb[0].mxu0 %v787
        %v908 = vpop.f32.mrb[0].mxu0
        %v909 = vadd.f32 %v584, %v908
        %v910 = vpop.f32.mrb[0].mxu0
        %v911 = vpop.f32.mrb[0].mxu0
        %v912 = vadd.f32 %v587, %v911
        %v913 = vpop.f32.mrb[0].mxu0
        %914 = vmatprep.mubr.bf16.mxu0 0
        %915 = vmatmul.mubr.bf16.gmra.mrb[0].mxu0 %v790
        %v916 = vpop.f32.mrb[0].mxu0
        %v917 = vadd.f32 %v592, %v916
        %v918 = vpop.f32.mrb[0].mxu0
        %v919 = vpop.f32.mrb[0].mxu0
        %v920 = vadd.f32 %v595, %v919
        %v921 = vpop.f32.mrb[0].mxu0
        %922 = vmatprep.mubr.bf16.mxu0 0
        %923 = vmatmul.mubr.bf16.gmra.mrb[0].mxu0 %v793
        %v924 = vpop.f32.mrb[0].mxu0
        %v925 = vadd.f32 %v600, %v924
        %v926 = vpop.f32.mrb[0].mxu0
        %v927 = vpop.f32.mrb[0].mxu0
        %v928 = vadd.f32 %v603, %v927
        %v929 = vpop.f32.mrb[0].mxu0
        %930 = vmatprep.mubr.bf16.mxu0 0
        %931 = vmatmul.mubr.bf16.gmra.mrb[0].mxu0 %v796
        %v932 = vpop.f32.mrb[0].mxu0
        %v933 = vadd.f32 %v608, %v932
        %v934 = vpop.f32.mrb[0].mxu0
        %v935 = vpop.f32.mrb[0].mxu0
        %v936 = vadd.f32 %v611, %v935
        %v937 = vpop.f32.mrb[0].mxu0
        %938 = vmatprep.mubr.bf16.mxu0 0
        %939 = vmatmul.mubr.bf16.gmra.mrb[0].mxu0 %v799
        %v940 = vpop.f32.mrb[0].mxu0
        %v941 = vadd.f32 %v616, %v940
        %v942 = vpop.f32.mrb[0].mxu0
        %v943 = vpop.f32.mrb[0].mxu0
        %v944 = vadd.f32 %v619, %v943
        %v945 = vpop.f32.mrb[0].mxu0
        %946 = vmatprep.mubr.bf16.mxu0 0
        %947 = vmatmul.mubr.bf16.gmra.mrb[0].mxu0 %v802
        %v948 = vpop.f32.mrb[0].mxu0
        %v949 = vadd.f32 %v624, %v948
        %v950 = vpop.f32.mrb[0].mxu0
        %v951 = vpop.f32.mrb[0].mxu0
        %v952 = vadd.f32 %v627, %v951
        %v953 = vpop.f32.mrb[0].mxu0
        %954 = vmatprep.mubr.bf16.mxu0 0
        %955 = vmatmul.mubr.bf16.gmra.mrb[0].mxu0 %v805
        %v956 = vpop.f32.mrb[0].mxu0
        %v957 = vadd.f32 %v632, %v956
        %v958 = vpop.f32.mrb[0].mxu0
        %v959 = vpop.f32.mrb[0].mxu0
        %v960 = vadd.f32 %v635, %v959
        %v961 = vpop.f32.mrb[0].mxu0
        %962 = vmatprep.mubr.bf16.mxu0 0
        %963 = vmatmul.mubr.bf16.gmra.mrb[0].mxu0 %v808
        %v964 = vpop.f32.mrb[0].mxu0
        %v965 = vadd.f32 %v640, %v964
        %v966 = vpop.f32.mrb[0].mxu0
        %v967 = vpop.f32.mrb[0].mxu0
        %v968 = vadd.f32 %v643, %v967
        %v969 = vpop.f32.mrb[0].mxu0
        %970 = vdwg.mxu0
        %s971 = sadd.s32 0, 32
        %s972 = sshra.s32 %s971, 3
        %s973 = sand.u32 %s971, 7
        %s974 = smul.addr %s972, 4
        %s975 = scalar_lea.vmem %s222, %s974
        %v976 = vld [vmem:[%s975] sm:$0xf]
        %v977 = vld [vmem:[%s975 + $0x4] sm:$0xf]
        %v978 = vld [vmem:[%s975 + $0x8] sm:$0xf]
        %v979 = vld [vmem:[%s975 + $0xc] sm:$0xf]
        %v980 = vld [vmem:[%s975 + $0x10] sm:$0xf]
        %v981 = vld [vmem:[%s975 + $0x14] sm:$0xf]
        %v982 = vld [vmem:[%s975 + $0x18] sm:$0xf]
        %v983 = vld [vmem:[%s975 + $0x1c] sm:$0xf]
        %v984 = vld [vmem:[%s975 + $0x20] sm:$0xf]
        %v985 = vld [vmem:[%s975 + $0x24] sm:$0xf]
        %v986 = vld [vmem:[%s975 + $0x28] sm:$0xf]
        %v987 = vld [vmem:[%s975 + $0x2c] sm:$0xf]
        %v988 = vld [vmem:[%s975 + $0x30] sm:$0xf]
        %v989 = vld [vmem:[%s975 + $0x34] sm:$0xf]
        %v990 = vld [vmem:[%s975 + $0x38] sm:$0xf]
        %v991 = vld [vmem:[%s975 + $0x3c] sm:$0xf]
        %v992 = vld [vmem:[%s975 + $0x40] sm:$0xf]
        %v993 = vld [vmem:[%s975 + $0x44] sm:$0xf]
        %v994 = vld [vmem:[%s975 + $0x48] sm:$0xf]
        %v995 = vld [vmem:[%s975 + $0x4c] sm:$0xf]
        %v996 = vld [vmem:[%s975 + $0x50] sm:$0xf]
        %v997 = vld [vmem:[%s975 + $0x54] sm:$0xf]
        %v998 = vld [vmem:[%s975 + $0x58] sm:$0xf]
        %v999 = vld [vmem:[%s975 + $0x5c] sm:$0xf]
        %v1000 = vld [vmem:[%s975 + $0x60] sm:$0xf]
        %v1001 = vld [vmem:[%s975 + $0x64] sm:$0xf]
        %v1002 = vld [vmem:[%s975 + $0x68] sm:$0xf]
        %v1003 = vld [vmem:[%s975 + $0x6c] sm:$0xf]
        %v1004 = vld [vmem:[%s975 + $0x70] sm:$0xf]
        %v1005 = vld [vmem:[%s975 + $0x74] sm:$0xf]
        %v1006 = vld [vmem:[%s975 + $0x78] sm:$0xf]
        %v1007 = vld [vmem:[%s975 + $0x7c] sm:$0xf]
        %s1008 = scalar_lea.vmem %s1, 96
        %v1009 = vld [vmem:[%s1008] sm:$0xf]
        %v1010 = vld [vmem:[%s1008 + $0x4] sm:$0xf]
        %v1011 = vld [vmem:[%s1008 + $0x8] sm:$0xf]
        %v1012 = vld [vmem:[%s1008 + $0xc] sm:$0xf]
        %v1013 = vld [vmem:[%s1008 + $0x10] sm:$0xf]
        %v1014 = vld [vmem:[%s1008 + $0x14] sm:$0xf]
        %v1015 = vld [vmem:[%s1008 + $0x18] sm:$0xf]
        %v1016 = vld [vmem:[%s1008 + $0x1c] sm:$0xf]
        %v1017 = vld [vmem:[%s1008 + $0x20] sm:$0xf]
        %v1018 = vld [vmem:[%s1008 + $0x24] sm:$0xf]
        %v1019 = vld [vmem:[%s1008 + $0x28] sm:$0xf]
        %v1020 = vld [vmem:[%s1008 + $0x2c] sm:$0xf]
        %v1053 = vunpack.c.l.b16 %v976
        %v1054 = vunpack.c.l.b16 %v977
        %v1055 = vunpack.c.l.b16 %v978
        %v1056 = vunpack.c.l.b16 %v979
        %v1057 = vunpack.c.l.b16 %v980
        %v1058 = vunpack.c.l.b16 %v981
        %v1059 = vunpack.c.l.b16 %v982
        %v1060 = vunpack.c.l.b16 %v983
        %v1061 = vunpack.c.l.b16 %v984
        %v1062 = vunpack.c.l.b16 %v985
        %v1063 = vunpack.c.l.b16 %v986
        %v1064 = vunpack.c.l.b16 %v987
        %v1065 = vunpack.c.l.b16 %v988
        %v1066 = vunpack.c.l.b16 %v989
        %v1067 = vunpack.c.l.b16 %v990
        %v1068 = vunpack.c.l.b16 %v991
        %v1069 = vunpack.c.l.b16 %v992
        %v1070 = vunpack.c.l.b16 %v993
        %v1071 = vunpack.c.l.b16 %v994
        %v1072 = vunpack.c.l.b16 %v995
        %v1073 = vunpack.c.l.b16 %v996
        %v1074 = vunpack.c.l.b16 %v997
        %v1075 = vunpack.c.l.b16 %v998
        %v1076 = vunpack.c.l.b16 %v999
        %v1077 = vunpack.c.l.b16 %v1000
        %v1078 = vunpack.c.l.b16 %v1001
        %v1079 = vunpack.c.l.b16 %v1002
        %v1080 = vunpack.c.l.b16 %v1003
        %v1081 = vunpack.c.l.b16 %v1004
        %v1082 = vunpack.c.l.b16 %v1005
        %v1083 = vunpack.c.l.b16 %v1006
        %v1084 = vunpack.c.l.b16 %v1007
        %v1085 = vpack.c.b16 %v1054, %v1053
        %v1086 = vpack.c.b16 %v1056, %v1055
        %v1087 = vpack.c.b16 %v1058, %v1057
        %v1088 = vpack.c.b16 %v1060, %v1059
        %v1089 = vpack.c.b16 %v1062, %v1061
        %v1090 = vpack.c.b16 %v1064, %v1063
        %v1091 = vpack.c.b16 %v1066, %v1065
        %v1092 = vpack.c.b16 %v1068, %v1067
        %v1093 = vpack.c.b16 %v1070, %v1069
        %v1094 = vpack.c.b16 %v1072, %v1071
        %v1095 = vpack.c.b16 %v1074, %v1073
        %v1096 = vpack.c.b16 %v1076, %v1075
        %v1097 = vpack.c.b16 %v1078, %v1077
        %v1098 = vpack.c.b16 %v1080, %v1079
        %v1099 = vpack.c.b16 %v1082, %v1081
        %v1100 = vpack.c.b16 %v1084, %v1083
        %v1113 = vunpack.c.l.b16 %v1009
        %v1114 = vunpack.c.l.b16 %v1010
        %v1115 = vunpack.c.l.b16 %v1011
        %v1116 = vunpack.c.l.b16 %v1012
        %v1117 = vunpack.c.l.b16 %v1013
        %v1118 = vunpack.c.l.b16 %v1014
        %v1119 = vunpack.c.l.b16 %v1015
        %v1120 = vunpack.c.l.b16 %v1016
        %v1121 = vunpack.c.l.b16 %v1017
        %v1122 = vunpack.c.l.b16 %v1018
        %v1123 = vunpack.c.l.b16 %v1019
        %v1124 = vunpack.c.l.b16 %v1020
        %v1125 = vpack.c.b16 %v1114, %v1113
        %v1126 = vpack.c.b16 %v1116, %v1115
        %v1127 = vpack.c.b16 %v1118, %v1117
        %v1128 = vpack.c.b16 %v1120, %v1119
        %v1129 = vpack.c.b16 %v1122, %v1121
        %v1130 = vpack.c.b16 %v1124, %v1123
        %v1138 = vsel %vm436, %v1085, 0
        %v1141 = vsel %vm436, %v1086, 0
        %v1144 = vsel %vm436, %v1087, 0
        %v1147 = vsel %vm436, %v1088, 0
        %v1150 = vsel %vm436, %v1089, 0
        %v1153 = vsel %vm436, %v1090, 0
        %v1156 = vsel %vm436, %v1091, 0
        %v1159 = vsel %vm436, %v1092, 0
        %v1162 = vsel %vm436, %v1093, 0
        %v1165 = vsel %vm436, %v1094, 0
        %v1168 = vsel %vm436, %v1095, 0
        %v1171 = vsel %vm436, %v1096, 0
        %v1174 = vsel %vm436, %v1097, 0
        %v1177 = vsel %vm436, %v1098, 0
        %v1180 = vsel %vm436, %v1099, 0
        %v1183 = vsel %vm436, %v1100, 0
        %1185 = vmatprep.subr.bf16.mxu0 0
        %1186 = vmatpush1.bf16.msra.mxu0 %v1125
        %1187 = vmatprep.subr.bf16.mxu0 0
        %1188 = vmatpush1.bf16.msra.mxu0 %v1126
        %1189 = vmatprep.subr.bf16.mxu0 0
        %1190 = vmatpush1.bf16.msra.mxu0 %v1127
        %1191 = vmatprep.subr.bf16.mxu0 0
        %1192 = vmatpush1.bf16.msra.mxu0 %v1128
        %1193 = vmatprep.subr.bf16.mxu0 0
        %1194 = vmatpush1.bf16.msra.mxu0 %v1129
        %1195 = vmatprep.subr.bf16.mxu0 0
        %1196 = vmatpush1.bf16.msra.mxu0 %v1130
        %1197 = vmatprep.subr.bf16.mxu0 0
        %1198 = vmatpush1.bf16.msra.mxu0 0
        %1199 = vmatprep.subr.bf16.mxu0 0
        %1200 = vmatpush1.bf16.msra.mxu0 0
        %1201 = vmatprep.subr.bf16.mxu0 0
        %1202 = vmatpush1.bf16.msra.mxu0 0
        %1203 = vmatprep.subr.bf16.mxu0 0
        %1204 = vmatpush1.bf16.msra.mxu0 0
        %1205 = vmatprep.subr.bf16.mxu0 0
        %1206 = vmatpush1.bf16.msra.mxu0 0
        %1207 = vmatprep.subr.bf16.mxu0 0
        %1208 = vmatpush1.bf16.msra.mxu0 0
        %1209 = vmatprep.subr.bf16.mxu0 0
        %1210 = vmatpush1.bf16.msra.mxu0 0
        %1211 = vmatprep.subr.bf16.mxu0 0
        %1212 = vmatpush1.bf16.msra.mxu0 0
        %1213 = vmatprep.subr.bf16.mxu0 0
        %1214 = vmatpush1.bf16.msra.mxu0 0
        %1215 = vmatprep.subr.bf16.mxu0 0
        %1216 = vmatpush1.bf16.msra.mxu0 0
        %1217 = vmatprep.mubr.bf16.mxu0 0
        %1218 = vmatmul.mubr.bf16.gmra.mrb[0].mxu0 %v1138
        %v1219 = vpop.f32.mrb[0].mxu0
        %v1220 = vadd.f32 0.0, %v1219
        %v1221 = vpop.f32.mrb[0].mxu0
        %v1222 = vpop.f32.mrb[0].mxu0
        %v1223 = vadd.f32 0.0, %v1222
        %v1224 = vpop.f32.mrb[0].mxu0
        %1225 = vmatprep.mubr.bf16.mxu0 0
        %1226 = vmatmul.mubr.bf16.gmra.mrb[0].mxu0 %v1141
        %v1227 = vpop.f32.mrb[0].mxu0
        %v1228 = vadd.f32 0.0, %v1227
        %v1229 = vpop.f32.mrb[0].mxu0
        %v1230 = vpop.f32.mrb[0].mxu0
        %v1231 = vadd.f32 0.0, %v1230
        %v1232 = vpop.f32.mrb[0].mxu0
        %1233 = vmatprep.mubr.bf16.mxu0 0
        %1234 = vmatmul.mubr.bf16.gmra.mrb[0].mxu0 %v1144
        %v1235 = vpop.f32.mrb[0].mxu0
        %v1236 = vadd.f32 0.0, %v1235
        %v1237 = vpop.f32.mrb[0].mxu0
        %v1238 = vpop.f32.mrb[0].mxu0
        %v1239 = vadd.f32 0.0, %v1238
        %v1240 = vpop.f32.mrb[0].mxu0
        %1241 = vmatprep.mubr.bf16.mxu0 0
        %1242 = vmatmul.mubr.bf16.gmra.mrb[0].mxu0 %v1147
        %v1243 = vpop.f32.mrb[0].mxu0
        %v1244 = vadd.f32 0.0, %v1243
        %v1245 = vpop.f32.mrb[0].mxu0
        %v1246 = vpop.f32.mrb[0].mxu0
        %v1247 = vadd.f32 0.0, %v1246
        %v1248 = vpop.f32.mrb[0].mxu0
        %1249 = vmatprep.mubr.bf16.mxu0 0
        %1250 = vmatmul.mubr.bf16.gmra.mrb[0].mxu0 %v1150
        %v1251 = vpop.f32.mrb[0].mxu0
        %v1252 = vadd.f32 0.0, %v1251
        %v1253 = vpop.f32.mrb[0].mxu0
        %v1254 = vpop.f32.mrb[0].mxu0
        %v1255 = vadd.f32 0.0, %v1254
        %v1256 = vpop.f32.mrb[0].mxu0
        %1257 = vmatprep.mubr.bf16.mxu0 0
        %1258 = vmatmul.mubr.bf16.gmra.mrb[0].mxu0 %v1153
        %v1259 = vpop.f32.mrb[0].mxu0
        %v1260 = vadd.f32 0.0, %v1259
        %v1261 = vpop.f32.mrb[0].mxu0
        %v1262 = vpop.f32.mrb[0].mxu0
        %v1263 = vadd.f32 0.0, %v1262
        %v1264 = vpop.f32.mrb[0].mxu0
        %1265 = vmatprep.mubr.bf16.mxu0 0
        %1266 = vmatmul.mubr.bf16.gmra.mrb[0].mxu0 %v1156
        %v1267 = vpop.f32.mrb[0].mxu0
        %v1268 = vadd.f32 0.0, %v1267
        %v1269 = vpop.f32.mrb[0].mxu0
        %v1270 = vpop.f32.mrb[0].mxu0
        %v1271 = vadd.f32 0.0, %v1270
        %v1272 = vpop.f32.mrb[0].mxu0
        %1273 = vmatprep.mubr.bf16.mxu0 0
        %1274 = vmatmul.mubr.bf16.gmra.mrb[0].mxu0 %v1159
        %v1275 = vpop.f32.mrb[0].mxu0
        %v1276 = vadd.f32 0.0, %v1275
        %v1277 = vpop.f32.mrb[0].mxu0
        %v1278 = vpop.f32.mrb[0].mxu0
        %v1279 = vadd.f32 0.0, %v1278
        %v1280 = vpop.f32.mrb[0].mxu0
        %1281 = vmatprep.mubr.bf16.mxu0 0
        %1282 = vmatmul.mubr.bf16.gmra.mrb[0].mxu0 %v1162
        %v1283 = vpop.f32.mrb[0].mxu0
        %v1284 = vadd.f32 0.0, %v1283
        %v1285 = vpop.f32.mrb[0].mxu0
        %v1286 = vpop.f32.mrb[0].mxu0
        %v1287 = vadd.f32 0.0, %v1286
        %v1288 = vpop.f32.mrb[0].mxu0
        %1289 = vmatprep.mubr.bf16.mxu0 0
        %1290 = vmatmul.mubr.bf16.gmra.mrb[0].mxu0 %v1165
        %v1291 = vpop.f32.mrb[0].mxu0
        %v1292 = vadd.f32 0.0, %v1291
        %v1293 = vpop.f32.mrb[0].mxu0
        %v1294 = vpop.f32.mrb[0].mxu0
        %v1295 = vadd.f32 0.0, %v1294
        %v1296 = vpop.f32.mrb[0].mxu0
        %1297 = vmatprep.mubr.bf16.mxu0 0
        %1298 = vmatmul.mubr.bf16.gmra.mrb[0].mxu0 %v1168
        %v1299 = vpop.f32.mrb[0].mxu0
        %v1300 = vadd.f32 0.0, %v1299
        %v1301 = vpop.f32.mrb[0].mxu0
        %v1302 = vpop.f32.mrb[0].mxu0
        %v1303 = vadd.f32 0.0, %v1302
        %v1304 = vpop.f32.mrb[0].mxu0
        %1305 = vmatprep.mubr.bf16.mxu0 0
        %1306 = vmatmul.mubr.bf16.gmra.mrb[0].mxu0 %v1171
        %v1307 = vpop.f32.mrb[0].mxu0
        %v1308 = vadd.f32 0.0, %v1307
        %v1309 = vpop.f32.mrb[0].mxu0
        %v1310 = vpop.f32.mrb[0].mxu0
        %v1311 = vadd.f32 0.0, %v1310
        %v1312 = vpop.f32.mrb[0].mxu0
        %1313 = vmatprep.mubr.bf16.mxu0 0
        %1314 = vmatmul.mubr.bf16.gmra.mrb[0].mxu0 %v1174
        %v1315 = vpop.f32.mrb[0].mxu0
        %v1316 = vadd.f32 0.0, %v1315
        %v1317 = vpop.f32.mrb[0].mxu0
        %v1318 = vpop.f32.mrb[0].mxu0
        %v1319 = vadd.f32 0.0, %v1318
        %v1320 = vpop.f32.mrb[0].mxu0
        %1321 = vmatprep.mubr.bf16.mxu0 0
        %1322 = vmatmul.mubr.bf16.gmra.mrb[0].mxu0 %v1177
        %v1323 = vpop.f32.mrb[0].mxu0
        %v1324 = vadd.f32 0.0, %v1323
        %v1325 = vpop.f32.mrb[0].mxu0
        %v1326 = vpop.f32.mrb[0].mxu0
        %v1327 = vadd.f32 0.0, %v1326
        %v1328 = vpop.f32.mrb[0].mxu0
        %1329 = vmatprep.mubr.bf16.mxu0 0
        %1330 = vmatmul.mubr.bf16.gmra.mrb[0].mxu0 %v1180
        %v1331 = vpop.f32.mrb[0].mxu0
        %v1332 = vadd.f32 0.0, %v1331
        %v1333 = vpop.f32.mrb[0].mxu0
        %v1334 = vpop.f32.mrb[0].mxu0
        %v1335 = vadd.f32 0.0, %v1334
        %v1336 = vpop.f32.mrb[0].mxu0
        %1337 = vmatprep.mubr.bf16.mxu0 0
        %1338 = vmatmul.mubr.bf16.gmra.mrb[0].mxu0 %v1183
        %v1339 = vpop.f32.mrb[0].mxu0
        %v1340 = vadd.f32 0.0, %v1339
        %v1341 = vpop.f32.mrb[0].mxu0
        %v1342 = vpop.f32.mrb[0].mxu0
        %v1343 = vadd.f32 0.0, %v1342
        %v1344 = vpop.f32.mrb[0].mxu0
        %1345 = vdwg.mxu0
        %v1346 = vadd.f32 %v845, %v1220
        %v1347 = vadd.f32 %v848, %v1223
        %v1348 = vadd.f32 %v853, %v1228
        %v1349 = vadd.f32 %v856, %v1231
        %v1350 = vadd.f32 %v861, %v1236
        %v1351 = vadd.f32 %v864, %v1239
        %v1352 = vadd.f32 %v869, %v1244
        %v1353 = vadd.f32 %v872, %v1247
        %v1354 = vadd.f32 %v877, %v1252
        %v1355 = vadd.f32 %v880, %v1255
        %v1356 = vadd.f32 %v885, %v1260
        %v1357 = vadd.f32 %v888, %v1263
        %v1358 = vadd.f32 %v893, %v1268
        %v1359 = vadd.f32 %v896, %v1271
        %v1360 = vadd.f32 %v901, %v1276
        %v1361 = vadd.f32 %v904, %v1279
        %v1362 = vadd.f32 %v909, %v1284
        %v1363 = vadd.f32 %v912, %v1287
        %v1364 = vadd.f32 %v917, %v1292
        %v1365 = vadd.f32 %v920, %v1295
        %v1366 = vadd.f32 %v925, %v1300
        %v1367 = vadd.f32 %v928, %v1303
        %v1368 = vadd.f32 %v933, %v1308
        %v1369 = vadd.f32 %v936, %v1311
        %v1370 = vadd.f32 %v941, %v1316
        %v1371 = vadd.f32 %v944, %v1319
        %v1372 = vadd.f32 %v949, %v1324
        %v1373 = vadd.f32 %v952, %v1327
        %v1374 = vadd.f32 %v957, %v1332
        %v1375 = vadd.f32 %v960, %v1335
        %v1376 = vadd.f32 %v965, %v1340
        %v1377 = vadd.f32 %v968, %v1343
        %v1378 = vlaneseq
        %v1379 = vshrl.u32 %v1378, 7
        %v1380 = vsub.s32 0, %v1379
        %v1381 = vrot.slane %v224, %v1380
        %v1382 = vmul.f32 %v1346, %v1381
        %v1383 = vmul.f32 %v1347, %v1381
        %v1384 = vmul.f32 %v1348, %v1381
        %v1385 = vmul.f32 %v1349, %v1381
        %v1386 = vmul.f32 %v1350, %v1381
        %v1387 = vmul.f32 %v1351, %v1381
        %v1388 = vmul.f32 %v1352, %v1381
        %v1389 = vmul.f32 %v1353, %v1381
        %v1390 = vmul.f32 %v1354, %v1381
        %v1391 = vmul.f32 %v1355, %v1381
        %v1392 = vmul.f32 %v1356, %v1381
        %v1393 = vmul.f32 %v1357, %v1381
        %v1394 = vmul.f32 %v1358, %v1381
        %v1395 = vmul.f32 %v1359, %v1381
        %v1396 = vmul.f32 %v1360, %v1381
        %v1397 = vmul.f32 %v1361, %v1381
        %v1398 = vmul.f32 %v1362, %v1381
        %v1399 = vmul.f32 %v1363, %v1381
        %v1400 = vmul.f32 %v1364, %v1381
        %v1401 = vmul.f32 %v1365, %v1381
        %v1402 = vmul.f32 %v1366, %v1381
        %v1403 = vmul.f32 %v1367, %v1381
        %v1404 = vmul.f32 %v1368, %v1381
        %v1405 = vmul.f32 %v1369, %v1381
        %v1406 = vmul.f32 %v1370, %v1381
        %v1407 = vmul.f32 %v1371, %v1381
        %v1408 = vmul.f32 %v1372, %v1381
        %v1409 = vmul.f32 %v1373, %v1381
        %v1410 = vmul.f32 %v1374, %v1381
        %v1411 = vmul.f32 %v1375, %v1381
        %v1412 = vmul.f32 %v1376, %v1381
        %v1413 = vmul.f32 %v1377, %v1381
        %v1414 = vlaneseq
        %v1415 = vshrl.u32 %v1414, 7
        %v1416 = vsub.s32 0, %v1415
        %v1417 = vrot.slane %v225, %v1416
        %v1418 = vadd.f32 %v1382, %v1417
        %v1419 = vadd.f32 %v1383, %v1417
        %v1420 = vadd.f32 %v1384, %v1417
        %v1421 = vadd.f32 %v1385, %v1417
        %v1422 = vadd.f32 %v1386, %v1417
        %v1423 = vadd.f32 %v1387, %v1417
        %v1424 = vadd.f32 %v1388, %v1417
        %v1425 = vadd.f32 %v1389, %v1417
        %v1426 = vadd.f32 %v1390, %v1417
        %v1427 = vadd.f32 %v1391, %v1417
        %v1428 = vadd.f32 %v1392, %v1417
        %v1429 = vadd.f32 %v1393, %v1417
        %v1430 = vadd.f32 %v1394, %v1417
        %v1431 = vadd.f32 %v1395, %v1417
        %v1432 = vadd.f32 %v1396, %v1417
        %v1433 = vadd.f32 %v1397, %v1417
        %v1434 = vadd.f32 %v1398, %v1417
        %v1435 = vadd.f32 %v1399, %v1417
        %v1436 = vadd.f32 %v1400, %v1417
        %v1437 = vadd.f32 %v1401, %v1417
        %v1438 = vadd.f32 %v1402, %v1417
        %v1439 = vadd.f32 %v1403, %v1417
        %v1440 = vadd.f32 %v1404, %v1417
        %v1441 = vadd.f32 %v1405, %v1417
        %v1442 = vadd.f32 %v1406, %v1417
        %v1443 = vadd.f32 %v1407, %v1417
        %v1444 = vadd.f32 %v1408, %v1417
        %v1445 = vadd.f32 %v1409, %v1417
        %v1446 = vadd.f32 %v1410, %v1417
        %v1447 = vadd.f32 %v1411, %v1417
        %v1448 = vadd.f32 %v1412, %v1417
        %v1449 = vadd.f32 %v1413, %v1417
        %v1450 = vmax.f32 %v1418, 0.0
        %v1451 = vmax.f32 %v1419, 0.0
        %v1452 = vmax.f32 %v1420, 0.0
        %v1453 = vmax.f32 %v1421, 0.0
        %v1454 = vmax.f32 %v1422, 0.0
        %v1455 = vmax.f32 %v1423, 0.0
        %v1456 = vmax.f32 %v1424, 0.0
        %v1457 = vmax.f32 %v1425, 0.0
        %v1458 = vmax.f32 %v1426, 0.0
        %v1459 = vmax.f32 %v1427, 0.0
        %v1460 = vmax.f32 %v1428, 0.0
        %v1461 = vmax.f32 %v1429, 0.0
        %v1462 = vmax.f32 %v1430, 0.0
        %v1463 = vmax.f32 %v1431, 0.0
        %v1464 = vmax.f32 %v1432, 0.0
        %v1465 = vmax.f32 %v1433, 0.0
        %v1466 = vmax.f32 %v1434, 0.0
        %v1467 = vmax.f32 %v1435, 0.0
        %v1468 = vmax.f32 %v1436, 0.0
        %v1469 = vmax.f32 %v1437, 0.0
        %v1470 = vmax.f32 %v1438, 0.0
        %v1471 = vmax.f32 %v1439, 0.0
        %v1472 = vmax.f32 %v1440, 0.0
        %v1473 = vmax.f32 %v1441, 0.0
        %v1474 = vmax.f32 %v1442, 0.0
        %v1475 = vmax.f32 %v1443, 0.0
        %v1476 = vmax.f32 %v1444, 0.0
        %v1477 = vmax.f32 %v1445, 0.0
        %v1478 = vmax.f32 %v1446, 0.0
        %v1479 = vmax.f32 %v1447, 0.0
        %v1480 = vmax.f32 %v1448, 0.0
        %v1481 = vmax.f32 %v1449, 0.0
        %1482 = vst [vmem:[%s217] sm:$0xff] %v1450
        %1483 = vst [vmem:[%s217 + $0x8] sm:$0xff] %v1451
        %1484 = vst [vmem:[%s217 + $0x10] sm:$0xff] %v1452
        %1485 = vst [vmem:[%s217 + $0x18] sm:$0xff] %v1453
        %1486 = vst [vmem:[%s217 + $0x20] sm:$0xff] %v1454
        %1487 = vst [vmem:[%s217 + $0x28] sm:$0xff] %v1455
        %1488 = vst [vmem:[%s217 + $0x30] sm:$0xff] %v1456
        %1489 = vst [vmem:[%s217 + $0x38] sm:$0xff] %v1457
        %1490 = vst [vmem:[%s217 + $0x40] sm:$0xff] %v1458
        %1491 = vst [vmem:[%s217 + $0x48] sm:$0xff] %v1459
        %1492 = vst [vmem:[%s217 + $0x50] sm:$0xff] %v1460
        %1493 = vst [vmem:[%s217 + $0x58] sm:$0xff] %v1461
        %1494 = vst [vmem:[%s217 + $0x60] sm:$0xff] %v1462
        %1495 = vst [vmem:[%s217 + $0x68] sm:$0xff] %v1463
        %1496 = vst [vmem:[%s217 + $0x70] sm:$0xff] %v1464
        %1497 = vst [vmem:[%s217 + $0x78] sm:$0xff] %v1465
        %1498 = vst [vmem:[%s217 + $0x80] sm:$0xff] %v1466
        %1499 = vst [vmem:[%s217 + $0x88] sm:$0xff] %v1467
        %1500 = vst [vmem:[%s217 + $0x90] sm:$0xff] %v1468
        %1501 = vst [vmem:[%s217 + $0x98] sm:$0xff] %v1469
        %1502 = vst [vmem:[%s217 + $0xa0] sm:$0xff] %v1470
        %1503 = vst [vmem:[%s217 + $0xa8] sm:$0xff] %v1471
        %1504 = vst [vmem:[%s217 + $0xb0] sm:$0xff] %v1472
        %1505 = vst [vmem:[%s217 + $0xb8] sm:$0xff] %v1473
        %1506 = vst [vmem:[%s217 + $0xc0] sm:$0xff] %v1474
        %1507 = vst [vmem:[%s217 + $0xc8] sm:$0xff] %v1475
        %1508 = vst [vmem:[%s217 + $0xd0] sm:$0xff] %v1476
        %1509 = vst [vmem:[%s217 + $0xd8] sm:$0xff] %v1477
        %1510 = vst [vmem:[%s217 + $0xe0] sm:$0xff] %v1478
        %1511 = vst [vmem:[%s217 + $0xe8] sm:$0xff] %v1479
        %1512 = vst [vmem:[%s217 + $0xf0] sm:$0xff] %v1480
        %1513 = vst [vmem:[%s217 + $0xf8] sm:$0xff] %v1481
        %v1514 = vadd.f32 %v1450, %v1451
        %v1515 = vadd.f32 %v1514, %v1452
        %v1516 = vadd.f32 %v1515, %v1453
        %v1517 = vadd.f32 %v1516, %v1454
        %v1518 = vadd.f32 %v1517, %v1455
        %v1519 = vadd.f32 %v1518, %v1456
        %v1520 = vadd.f32 %v1519, %v1457
        %v1521 = vadd.f32 %v1520, %v1458
        %v1522 = vadd.f32 %v1521, %v1459
        %v1523 = vadd.f32 %v1522, %v1460
        %v1524 = vadd.f32 %v1523, %v1461
        %v1525 = vadd.f32 %v1524, %v1462
        %v1526 = vadd.f32 %v1525, %v1463
        %v1527 = vadd.f32 %v1526, %v1464
        %v1528 = vadd.f32 %v1527, %v1465
        %v1529 = vadd.f32 %v1528, %v1466
        %v1530 = vadd.f32 %v1529, %v1467
        %v1531 = vadd.f32 %v1530, %v1468
        %v1532 = vadd.f32 %v1531, %v1469
        %v1533 = vadd.f32 %v1532, %v1470
        %v1534 = vadd.f32 %v1533, %v1471
        %v1535 = vadd.f32 %v1534, %v1472
        %v1536 = vadd.f32 %v1535, %v1473
        %v1537 = vadd.f32 %v1536, %v1474
        %v1538 = vadd.f32 %v1537, %v1475
        %v1539 = vadd.f32 %v1538, %v1476
        %v1540 = vadd.f32 %v1539, %v1477
        %v1541 = vadd.f32 %v1540, %v1478
        %v1542 = vadd.f32 %v1541, %v1479
        %v1543 = vadd.f32 %v1542, %v1480
        %v1544 = vadd.f32 %v1543, %v1481
        %v1545 = vrot.slane %v1544, 4
        %v1546 = vadd.f32 %v1544, %v1545
        %v1547 = vrot.slane %v1546, 2
        %v1548 = vadd.f32 %v1546, %v1547
        %v1549 = vrot.slane %v1548, 1
        %v1550 = vadd.f32 %v1548, %v1549
        %v1551 = vadd.f32 %v1550, 0.0
        %v1552 = vmul.f32 %v1551, 0.00390625
        %v1553 = vld [vmem:[%s3] sm:$0xff]
        %v1554 = vld [vmem:[%s3 + $0x8] sm:$0xff]
        %v1555 = vld [vmem:[%s3 + $0x10] sm:$0xff]
        %v1556 = vld [vmem:[%s3 + $0x18] sm:$0xff]
        %v1557 = vld [vmem:[%s3 + $0x20] sm:$0xff]
        %v1558 = vld [vmem:[%s3 + $0x28] sm:$0xff]
        %v1559 = vld [vmem:[%s3 + $0x30] sm:$0xff]
        %v1560 = vld [vmem:[%s3 + $0x38] sm:$0xff]
        %v1561 = vld [vmem:[%s3 + $0x40] sm:$0xff]
        %v1562 = vld [vmem:[%s3 + $0x48] sm:$0xff]
        %v1563 = vld [vmem:[%s3 + $0x50] sm:$0xff]
        %v1564 = vld [vmem:[%s3 + $0x58] sm:$0xff]
        %v1565 = vld [vmem:[%s3 + $0x60] sm:$0xff]
        %v1566 = vld [vmem:[%s3 + $0x68] sm:$0xff]
        %v1567 = vld [vmem:[%s3 + $0x70] sm:$0xff]
        %v1568 = vld [vmem:[%s3 + $0x78] sm:$0xff]
        %1569 = vmatprep.subr.mxu0 0.0
        %1570 = vmatpush1.msra.mxu0 %v1553
        %1571 = vmatprep.subr.mxu0 0.0
        %1572 = vmatpush1.msra.mxu0 %v1554
        %1573 = vmatprep.subr.mxu0 0.0
        %1574 = vmatpush1.msra.mxu0 %v1555
        %1575 = vmatprep.subr.mxu0 0.0
        %1576 = vmatpush1.msra.mxu0 %v1556
        %1577 = vmatprep.subr.mxu0 0.0
        %1578 = vmatpush1.msra.mxu0 %v1557
        %1579 = vmatprep.subr.mxu0 0.0
        %1580 = vmatpush1.msra.mxu0 %v1558
        %1581 = vmatprep.subr.mxu0 0.0
        %1582 = vmatpush1.msra.mxu0 %v1559
        %1583 = vmatprep.subr.mxu0 0.0
        %1584 = vmatpush1.msra.mxu0 %v1560
        %1585 = vmatprep.subr.mxu0 0.0
        %1586 = vmatpush1.msra.mxu0 %v1561
        %1587 = vmatprep.subr.mxu0 0.0
        %1588 = vmatpush1.msra.mxu0 %v1562
        %1589 = vmatprep.subr.mxu0 0.0
        %1590 = vmatpush1.msra.mxu0 %v1563
        %1591 = vmatprep.subr.mxu0 0.0
        %1592 = vmatpush1.msra.mxu0 %v1564
        %1593 = vmatprep.subr.mxu0 0.0
        %1594 = vmatpush1.msra.mxu0 %v1565
        %1595 = vmatprep.subr.mxu0 0.0
        %1596 = vmatpush1.msra.mxu0 %v1566
        %1597 = vmatprep.subr.mxu0 0.0
        %1598 = vmatpush1.msra.mxu0 %v1567
        %1599 = vmatprep.subr.mxu0 0.0
        %1600 = vmatpush1.msra.mxu0 %v1568
        %1601 = vmatprep.subr.mxu0 0.0
        %1602 = vmatpush1.msra.mxu0 0.0
        %1603 = vmatprep.subr.mxu0 0.0
        %1604 = vmatpush1.msra.mxu0 0.0
        %1605 = vmatprep.subr.mxu0 0.0
        %1606 = vmatpush1.msra.mxu0 0.0
        %1607 = vmatprep.subr.mxu0 0.0
        %1608 = vmatpush1.msra.mxu0 0.0
        %1609 = vmatprep.subr.mxu0 0.0
        %1610 = vmatpush1.msra.mxu0 0.0
        %1611 = vmatprep.subr.mxu0 0.0
        %1612 = vmatpush1.msra.mxu0 0.0
        %1613 = vmatprep.subr.mxu0 0.0
        %1614 = vmatpush1.msra.mxu0 0.0
        %1615 = vmatprep.subr.mxu0 0.0
        %1616 = vmatpush1.msra.mxu0 0.0
        %1617 = vmatprep.subr.mxu0 0.0
        %1618 = vmatpush1.msra.mxu0 0.0
        %1619 = vmatprep.subr.mxu0 0.0
        %1620 = vmatpush1.msra.mxu0 0.0
        %1621 = vmatprep.subr.mxu0 0.0
        %1622 = vmatpush1.msra.mxu0 0.0
        %1623 = vmatprep.subr.mxu0 0.0
        %1624 = vmatpush1.msra.mxu0 0.0
        %1625 = vmatprep.subr.mxu0 0.0
        %1626 = vmatpush1.msra.mxu0 0.0
        %1627 = vmatprep.subr.mxu0 0.0
        %1628 = vmatpush1.msra.mxu0 0.0
        %1629 = vmatprep.subr.mxu0 0.0
        %1630 = vmatpush1.msra.mxu0 0.0
        %1631 = vmatprep.subr.mxu0 0.0
        %1632 = vmatpush1.msra.mxu0 0.0
        %1633 = vmatprep.mubr.f32.mxu0 0.0
        %1634 = vmatmul.mubr.f32.gmra.mrb[0].mxu0 %v1552
        %v1635 = vpop.f32.mrb[0].mxu0
        %v1636 = vadd.f32 0.0, %v1635
        %v1637 = vpop.f32.mrb[0].mxu0
        %1638 = vdwg.mxu0
        %v1639 = vld [vmem:[%s4] sm:$0x1]
        %v1640 = vmul.f32 %v1636, %v1639
        %v1641 = vld [vmem:[%s4 + $0x1] sm:$0x1]
        %v1642 = vadd.f32 %v1640, %v1641
        %v1643 = vxor.u32 %v1642, 2147483648
        %v1644 = vmul.f32 %v1643, 1.442695
        %v1645 = vpow.pop %v1644
        %v1646 = vadd.f32 %v1645, 1.0
        %v1647 = vrcp.pop %v1646
        %v1648 = vmul.f32 1.0, %v1647
        %v1649 = vld [vmem:[%s217] sm:$0xff]
        %v1650 = vld [vmem:[%s217 + $0x8] sm:$0xff]
        %v1651 = vld [vmem:[%s217 + $0x10] sm:$0xff]
        %v1652 = vld [vmem:[%s217 + $0x18] sm:$0xff]
        %v1653 = vld [vmem:[%s217 + $0x20] sm:$0xff]
        %v1654 = vld [vmem:[%s217 + $0x28] sm:$0xff]
        %v1655 = vld [vmem:[%s217 + $0x30] sm:$0xff]
        %v1656 = vld [vmem:[%s217 + $0x38] sm:$0xff]
        %v1657 = vld [vmem:[%s217 + $0x40] sm:$0xff]
        %v1658 = vld [vmem:[%s217 + $0x48] sm:$0xff]
        %v1659 = vld [vmem:[%s217 + $0x50] sm:$0xff]
        %v1660 = vld [vmem:[%s217 + $0x58] sm:$0xff]
        %v1661 = vld [vmem:[%s217 + $0x60] sm:$0xff]
        %v1662 = vld [vmem:[%s217 + $0x68] sm:$0xff]
        %v1663 = vld [vmem:[%s217 + $0x70] sm:$0xff]
        %v1664 = vld [vmem:[%s217 + $0x78] sm:$0xff]
        %v1665 = vld [vmem:[%s217 + $0x80] sm:$0xff]
        %v1666 = vld [vmem:[%s217 + $0x88] sm:$0xff]
        %v1667 = vld [vmem:[%s217 + $0x90] sm:$0xff]
        %v1668 = vld [vmem:[%s217 + $0x98] sm:$0xff]
        %v1669 = vld [vmem:[%s217 + $0xa0] sm:$0xff]
        %v1670 = vld [vmem:[%s217 + $0xa8] sm:$0xff]
        %v1671 = vld [vmem:[%s217 + $0xb0] sm:$0xff]
        %v1672 = vld [vmem:[%s217 + $0xb8] sm:$0xff]
        %v1673 = vld [vmem:[%s217 + $0xc0] sm:$0xff]
        %v1674 = vld [vmem:[%s217 + $0xc8] sm:$0xff]
        %v1675 = vld [vmem:[%s217 + $0xd0] sm:$0xff]
        %v1676 = vld [vmem:[%s217 + $0xd8] sm:$0xff]
        %v1677 = vld [vmem:[%s217 + $0xe0] sm:$0xff]
        %v1678 = vld [vmem:[%s217 + $0xe8] sm:$0xff]
        %v1679 = vld [vmem:[%s217 + $0xf0] sm:$0xff]
        %v1680 = vld [vmem:[%s217 + $0xf8] sm:$0xff]
        %v1681 = vlaneseq
        %v1682 = vshrl.u32 %v1681, 7
        %v1683 = vsub.s32 0, %v1682
        %v1684 = vrot.slane %v1648, %v1683
        %v1685 = vmul.f32 %v1649, %v1684
        %v1686 = vmul.f32 %v1650, %v1684
        %v1687 = vmul.f32 %v1651, %v1684
        %v1688 = vmul.f32 %v1652, %v1684
        %v1689 = vmul.f32 %v1653, %v1684
        %v1690 = vmul.f32 %v1654, %v1684
        %v1691 = vmul.f32 %v1655, %v1684
        %v1692 = vmul.f32 %v1656, %v1684
        %v1693 = vmul.f32 %v1657, %v1684
        %v1694 = vmul.f32 %v1658, %v1684
        %v1695 = vmul.f32 %v1659, %v1684
        %v1696 = vmul.f32 %v1660, %v1684
        %v1697 = vmul.f32 %v1661, %v1684
        %v1698 = vmul.f32 %v1662, %v1684
        %v1699 = vmul.f32 %v1663, %v1684
        %v1700 = vmul.f32 %v1664, %v1684
        %v1701 = vmul.f32 %v1665, %v1684
        %v1702 = vmul.f32 %v1666, %v1684
        %v1703 = vmul.f32 %v1667, %v1684
        %v1704 = vmul.f32 %v1668, %v1684
        %v1705 = vmul.f32 %v1669, %v1684
        %v1706 = vmul.f32 %v1670, %v1684
        %v1707 = vmul.f32 %v1671, %v1684
        %v1708 = vmul.f32 %v1672, %v1684
        %v1709 = vmul.f32 %v1673, %v1684
        %v1710 = vmul.f32 %v1674, %v1684
        %v1711 = vmul.f32 %v1675, %v1684
        %v1712 = vmul.f32 %v1676, %v1684
        %v1713 = vmul.f32 %v1677, %v1684
        %v1714 = vmul.f32 %v1678, %v1684
        %v1715 = vmul.f32 %v1679, %v1684
        %v1716 = vmul.f32 %v1680, %v1684
        %1717 = vst [vmem:[%s217] sm:$0xff] %v1685
        %1718 = vst [vmem:[%s217 + $0x8] sm:$0xff] %v1686
        %1719 = vst [vmem:[%s217 + $0x10] sm:$0xff] %v1687
        %1720 = vst [vmem:[%s217 + $0x18] sm:$0xff] %v1688
        %1721 = vst [vmem:[%s217 + $0x20] sm:$0xff] %v1689
        %1722 = vst [vmem:[%s217 + $0x28] sm:$0xff] %v1690
        %1723 = vst [vmem:[%s217 + $0x30] sm:$0xff] %v1691
        %1724 = vst [vmem:[%s217 + $0x38] sm:$0xff] %v1692
        %1725 = vst [vmem:[%s217 + $0x40] sm:$0xff] %v1693
        %1726 = vst [vmem:[%s217 + $0x48] sm:$0xff] %v1694
        %1727 = vst [vmem:[%s217 + $0x50] sm:$0xff] %v1695
        %1728 = vst [vmem:[%s217 + $0x58] sm:$0xff] %v1696
        %1729 = vst [vmem:[%s217 + $0x60] sm:$0xff] %v1697
        %1730 = vst [vmem:[%s217 + $0x68] sm:$0xff] %v1698
        %1731 = vst [vmem:[%s217 + $0x70] sm:$0xff] %v1699
        %1732 = vst [vmem:[%s217 + $0x78] sm:$0xff] %v1700
        %1733 = vst [vmem:[%s217 + $0x80] sm:$0xff] %v1701
        %1734 = vst [vmem:[%s217 + $0x88] sm:$0xff] %v1702
        %1735 = vst [vmem:[%s217 + $0x90] sm:$0xff] %v1703
        %1736 = vst [vmem:[%s217 + $0x98] sm:$0xff] %v1704
        %1737 = vst [vmem:[%s217 + $0xa0] sm:$0xff] %v1705
        %1738 = vst [vmem:[%s217 + $0xa8] sm:$0xff] %v1706
        %1739 = vst [vmem:[%s217 + $0xb0] sm:$0xff] %v1707
        %1740 = vst [vmem:[%s217 + $0xb8] sm:$0xff] %v1708
        %1741 = vst [vmem:[%s217 + $0xc0] sm:$0xff] %v1709
        %1742 = vst [vmem:[%s217 + $0xc8] sm:$0xff] %v1710
        %1743 = vst [vmem:[%s217 + $0xd0] sm:$0xff] %v1711
        %1744 = vst [vmem:[%s217 + $0xd8] sm:$0xff] %v1712
        %1745 = vst [vmem:[%s217 + $0xe0] sm:$0xff] %v1713
        %1746 = vst [vmem:[%s217 + $0xe8] sm:$0xff] %v1714
        %1747 = vst [vmem:[%s217 + $0xf0] sm:$0xff] %v1715
        %1748 = vst [vmem:[%s217 + $0xf8] sm:$0xff] %v1716
        %s1749 = sand.u32 %s137, 1
        %s1750 = scalar_lea.sflag [#allocation3], %s1749
        %s1751 = sand.u32 %s137, 1
        %s1752 = smul.addr %s1751, 256
        %s1753 = scalar_lea.vmem [#allocation2], %s1752
        // Predicated region
        $region41: #{attention_refinement_forward.1} parent=39 // pred_check
          %p1754 = pneg %p147
        $region42: #{attention_refinement_forward.1} parent=39 // pred_check_branch
          %1756 = sbr.rel (%p1754) target = $region44
        $region43: #{attention_refinement_forward.1} parent=39 // pred_region
          %s1758 = ssub.s32 4096, 4096
          %1759 = vsyncadd %s1750, %s1758
          %s1760 = smul.addr %s19, 32
          %s1761 = smul.addr %s1760, 128
          %s1762 = scalar_lea.hbm %s5, %s1761
          %s1763 = sshll.u32 %s1753, 4
          %s1764 = int_to_ptr.vmem [resolvable:$true] %s1763
          %1769 = dma.vmem_to_hbm [thread:$0]  %s1764, 4096, %s1762, %s1750, 128, 128, 8
        $region44: #{attention_refinement_forward.1} parent=39 // pred_fallthru
          _
      $region40: #{attention_refinement_forward.1} parent=5 // pred_fallthru
        _
      %p1770 = scmp.le.s32.totalorder 2, %s14
      // Predicated region
      $region45: #{attention_refinement_forward.1} parent=5 // pred_check
        %p1771 = pneg %p1770
      $region46: #{attention_refinement_forward.1} parent=5 // pred_check_branch
        %1773 = sbr.rel (%p1771) target = $region48
      $region47: #{attention_refinement_forward.1} parent=5 // pred_region
        %s1774 = ssub.s32 %s14, 2
        // Predicated region
        $region49: #{attention_refinement_forward.1} parent=47 // pred_check
          %p1775 = pneg %p153
        $region50: #{attention_refinement_forward.1} parent=47 // pred_check_branch
          %1777 = sbr.rel (%p1775) target = $region52
        $region51: #{attention_refinement_forward.1} parent=47 // pred_region
          %s1778 = sand.u32 %s138, 1
          %s1779 = scalar_lea.sflag [#allocation3], %s1778
          %s1780 = sand.u32 %s138, 1
          %s1781 = smul.addr %s1780, 256
          %s1782 = scalar_lea.vmem [#allocation2], %s1781
          %1783 = dma.done %s1779, 4096
        $region52: #{attention_refinement_forward.1} parent=47 // pred_fallthru
          _
      $region48: #{attention_refinement_forward.1} parent=5 // pred_fallthru
        _
    $region6: #{attention_refinement_forward.1} parent=1 // loop_footer
      %s18 = sadd.s32 1, %s14
    $region7: #{attention_refinement_forward.1} parent=1 // loop_footer_branch
      %13 = sbr.rel target = $region3
    $region8: #{attention_refinement_forward.1} parent=1 // loop_exit
      _
    %1784 = vsyncpa [#allocation3], 1
    %s1785 = scalar_lea.sflag [#allocation3], 1
    %1786 = vsyncpa %s1785, 1

</llo_original>
